<compile_context>
chip_gen: v5e
topology: v5e:2x2
jax: 0.10.0
libtpu: 0.0.40
codegen_flags: <defaults>
</compile_context>

<pallas_src>
import functools

import jax
import jax.numpy as jnp
from jax.experimental import pallas as pl
from jax.experimental.pallas import tpu as pltpu


# --------------------------------------------------------------------------
# Fully fused kernel: one grid step == one batch element.
# --------------------------------------------------------------------------
def _tfan_fused_kernel(seg_ref, x_ref, ws_ref, bs_ref, wgb_ref, bgb_ref, o_ref,
                       pad_ref, *, K, L, norm_nc, repeat_N, eps):
    pw = K // 2
    Ch = pad_ref.shape[-1]

    # Stage 0: zero the halo rows once, stage the interpolated segmap into the
    # padded bf16 VMEM scratch (MXU operand precision).
    pad_ref[...] = jnp.zeros_like(pad_ref)
    pad_ref[pl.ds(pw, L), :] = seg_ref[...].astype(pad_ref.dtype)

    # Stage 1: repeat_N x (shared Conv1d + ReLU); `temp` stays resident in VMEM.
    bias_s = bs_ref[...].astype(jnp.float32)               # (1, Ch)
    for _ in range(repeat_N):                              # small & static
        acc = jnp.zeros((L, Ch), jnp.float32)
        for k in range(K):                                 # unrolled taps
            acc += jnp.dot(pad_ref[pl.ds(k, L), :], ws_ref[k],
                           preferred_element_type=jnp.float32)
        acc = jnp.maximum(acc + bias_s, 0.0)               # bias + ReLU in f32
        pad_ref[pl.ds(pw, L), :] = acc.astype(pad_ref.dtype)

    # Stage 2: gamma|beta Conv1d (concatenated weights), produced directly in
    # (2*norm_nc, L) layout -> no transpose, no extra HBM roundtrip.
    gb = jnp.zeros((2 * norm_nc, L), jnp.float32)
    for k in range(K):
        # (2*norm_nc, Ch) @ (L, Ch)^T  contracted over channels -> (2*norm_nc, L)
        gb += jax.lax.dot_general(
            wgb_ref[k], pad_ref[pl.ds(k, L), :],
            dimension_numbers=(((1,), (1,)), ((), ())),
            preferred_element_type=jnp.float32)
    gb += bgb_ref[...].astype(jnp.float32)                 # (2*norm_nc, 1) bcast
    gamma = gb[:norm_nc, :]
    beta = gb[norm_nc:, :]

    # Stage 3: InstanceNorm1d (affine=False, biased var) + FiLM, all f32.
    xv = x_ref[...].astype(jnp.float32)                    # (norm_nc, L)
    mean = jnp.mean(xv, axis=-1, keepdims=True)
    xc = xv - mean
    var = jnp.mean(xc * xc, axis=-1, keepdims=True)
    normalized = xc * jax.lax.rsqrt(var + eps)
    o_ref[...] = (normalized * (1.0 + gamma) + beta).astype(o_ref.dtype)


# --------------------------------------------------------------------------
# Wrapper: nearest interpolation + weight packing + one pallas_call.
# --------------------------------------------------------------------------
def tfan_1d_forward(params, x_ncl, segmap_ncl, *, repeat_N=3, eps=1e-5):
    """x_ncl: (B, norm_nc, L); segmap_ncl: (B, label_nc, L_seg)."""
    B, norm_nc, L = x_ncl.shape
    K, label_nc, Ch = params["w_shared"].shape
    assert label_nc == Ch, "repeated mlp_shared requires label_nc == nhidden"
    pw = K // 2
    Lp = L + 2 * pw

    # F.interpolate(mode='nearest') to length L, laid out NLC, bf16 for DMA/MXU.
    idx = (jnp.arange(L) * segmap_ncl.shape[2]) // L
    seg_nlc = jnp.transpose(segmap_ncl, (0, 2, 1))[:, idx, :].astype(jnp.bfloat16)

    # Pack weights: bf16 MXU operands, f32 biases; gamma/beta concatenated and
    # pre-transposed to (K, 2*norm_nc, Ch) for the in-kernel NT matmul.
    ws = params["w_shared"].astype(jnp.bfloat16)                       # (K, Ch, Ch)
    bs = params["b_shared"].reshape(1, Ch).astype(jnp.float32)
    wgb = jnp.concatenate([params["w_gamma"], params["w_beta"]], axis=2)
    wgb = jnp.transpose(wgb, (0, 2, 1)).astype(jnp.bfloat16)           # (K, 2nc, Ch)
    bgb = jnp.concatenate([params["b_gamma"], params["b_beta"]])
    bgb = bgb.reshape(2 * norm_nc, 1).astype(jnp.float32)

    kernel = functools.partial(
        _tfan_fused_kernel, K=K, L=L, norm_nc=norm_nc, repeat_N=repeat_N, eps=eps)

    return pl.pallas_call(
        kernel,
        out_shape=jax.ShapeDtypeStruct((B, norm_nc, L), x_ncl.dtype),
        grid=(B,),
        in_specs=[
            pl.BlockSpec((pl.Squeezed(), L, Ch), lambda i: (i, 0, 0)),       # seg
            pl.BlockSpec((pl.Squeezed(), norm_nc, L), lambda i: (i, 0, 0)),  # x
            pl.BlockSpec((K, Ch, Ch), lambda i: (0, 0, 0)),                  # w_shared
            pl.BlockSpec((1, Ch), lambda i: (0, 0)),                         # b_shared
            pl.BlockSpec((K, 2 * norm_nc, Ch), lambda i: (0, 0, 0)),         # w_gamma|beta
            pl.BlockSpec((2 * norm_nc, 1), lambda i: (0, 0)),                # b_gamma|beta
        ],
        out_specs=pl.BlockSpec((pl.Squeezed(), norm_nc, L), lambda i: (i, 0, 0)),
        scratch_shapes=[pltpu.VMEM((Lp, Ch), jnp.bfloat16)],   # padded `temp`
        compiler_params=pltpu.CompilerParams(dimension_semantics=("parallel",)),
    )(seg_nlc, x_ncl, ws, bs, wgb, bgb)


# --------------------------------------------------------------------------
# Pure-JAX f32 reference (numerical sanity check)
# --------------------------------------------------------------------------
def _conv1d_ref(x_nlc, w_kio, b, relu):
    K = w_kio.shape[0]
    pw = K // 2
    L = x_nlc.shape[1]
    xp = jnp.pad(x_nlc, ((0, 0), (pw, pw), (0, 0)))
    out = b[None, None, :]
    for k in range(K):
        out = out + jnp.einsum("bli,io->blo", xp[:, k:k + L, :], w_kio[k])
    return jnp.maximum(out, 0.0) if relu else out


def _tfan_ref(params, x_ncl, segmap_ncl, repeat_N=3, eps=1e-5):
    L = x_ncl.shape[2]
    idx = (jnp.arange(L) * segmap_ncl.shape[2]) // L
    temp = jnp.transpose(segmap_ncl[:, :, idx], (0, 2, 1))
    for _ in range(repeat_N):
        temp = _conv1d_ref(temp, params["w_shared"], params["b_shared"], True)
    gamma = jnp.transpose(
        _conv1d_ref(temp, params["w_gamma"], params["b_gamma"], False), (0, 2, 1))
    beta = jnp.transpose(
        _conv1d_ref(temp, params["w_beta"], params["b_beta"], False), (0, 2, 1))
    mean = jnp.mean(x_ncl, axis=-1, keepdims=True)
    var = jnp.mean((x_ncl - mean) ** 2, axis=-1, keepdims=True)
    normalized = (x_ncl - mean) / jnp.sqrt(var + eps)
    return normalized * (1.0 + gamma) + beta


# --------------------------------------------------------------------------
# Deterministic parameter init (shapes per TFAN_1D.__init__); weights stored
# as (K, Cin, Cout) -- self-consistent with both kernel and reference.
# --------------------------------------------------------------------------
def init_params(key, norm_nc, label_nc=128, nhidden=128, ks=5):
    k = jax.random.split(key, 6)
    scale = 0.05
    return {
        "w_shared": scale * jax.random.normal(k[0], (ks, label_nc, nhidden), jnp.float32),
        "b_shared": scale * jax.random.normal(k[1], (nhidden,), jnp.float32),
        "w_gamma": scale * jax.random.normal(k[2], (ks, nhidden, norm_nc), jnp.float32),
        "b_gamma": scale * jax.random.normal(k[3], (norm_nc,), jnp.float32),
        "w_beta": scale * jax.random.normal(k[4], (ks, nhidden, norm_nc), jnp.float32),
        "b_beta": scale * jax.random.normal(k[5], (norm_nc,), jnp.float32),
    }


if __name__ == "__main__":
    key = jax.random.PRNGKey(0)
    k_x, k_seg, k_p = jax.random.split(key, 3)

    B, norm_nc, L = 2, 8, 16
    label_nc, L_seg = 128, 8  # label_nc must equal nhidden=128 for repeat_N > 1

    x = jax.random.normal(k_x, (B, norm_nc, L), jnp.float32)
    segmap = jax.random.normal(k_seg, (B, label_nc, L_seg), jnp.float32)
    params = init_params(k_p, norm_nc, label_nc=label_nc)

    fwd = jax.jit(functools.partial(tfan_1d_forward, repeat_N=3))
    out = jax.block_until_ready(fwd(params, x, segmap))

    ref = _tfan_ref(params, x, segmap, repeat_N=3)
    assert out.shape == (B, norm_nc, L)
    # bf16 MXU operands (f32 accumulation) -> looser tolerance than pure f32.
    rel = float(jnp.max(jnp.abs(out - ref)) / (jnp.max(jnp.abs(ref)) + 1e-6))
    assert rel < 5e-2, f"max relative error too large: {rel}"

    print("KERNEL_OK")
</pallas_src>

<mosaic_0001>
module attributes {stable_mosaic.version = 11 : i64} {
  func.func @_tfan_fused_kernel(%arg0: i32, %arg1: memref<1x16x128xbf16, #tpu.memory_space<vmem>>, %arg2: memref<1x8x16xf32, #tpu.memory_space<vmem>>, %arg3: memref<5x128x128xbf16, #tpu.memory_space<vmem>>, %arg4: memref<1x128xf32, #tpu.memory_space<vmem>>, %arg5: memref<5x16x128xbf16, #tpu.memory_space<vmem>>, %arg6: memref<16x1xf32, #tpu.memory_space<vmem>>, %arg7: memref<1x8x16xf32, #tpu.memory_space<vmem>>, %arg8: memref<20x128xbf16, #tpu.memory_space<vmem>>) attributes {dimension_semantics = [#tpu.dimension_semantics<parallel>], iteration_bounds = array<i64: 2>, scalar_prefetch = 0 : i64, scratch_operands = 1 : i64, tpu.core_type = #tpu.core_type<tc>, window_params = [{transform_indices = @transform_0, window_bounds = array<i64: 1, 16, 128>}, {transform_indices = @transform_1, window_bounds = array<i64: 1, 8, 16>}, {pipeline_mode = #tpu.pipeline_mode<synchronous>, transform_indices = @transform_2, window_bounds = array<i64: 5, 128, 128>}, {pipeline_mode = #tpu.pipeline_mode<synchronous>, transform_indices = @transform_3, window_bounds = array<i64: 1, 128>}, {pipeline_mode = #tpu.pipeline_mode<synchronous>, transform_indices = @transform_4, window_bounds = array<i64: 5, 16, 128>}, {pipeline_mode = #tpu.pipeline_mode<synchronous>, transform_indices = @transform_5, window_bounds = array<i64: 16, 1>}, {transform_indices = @transform_6, window_bounds = array<i64: 1, 8, 16>}]} {
    %cst = arith.constant 0.000000e+00 : bf16
    %0 = vector.broadcast %cst : bf16 to vector<20x128xbf16>
    %c0 = arith.constant 0 : index
    %c0_0 = arith.constant 0 : index
    %1 = vector.load %arg8[%c0, %c0_0] : memref<20x128xbf16, #tpu.memory_space<vmem>>, vector<20x128xbf16>
    tpu.vector_store %arg8[%c0, %c0_0], %0 {strides = array<i32>} : memref<20x128xbf16, #tpu.memory_space<vmem>>, vector<20x128xbf16>,
    %c0_1 = arith.constant 0 : index
    %c0_2 = arith.constant 0 : index
    %c0_3 = arith.constant 0 : index
    %2 = vector.load %arg1[%c0_1, %c0_2, %c0_3] : memref<1x16x128xbf16, #tpu.memory_space<vmem>>, vector<1x16x128xbf16>
    %3 = vector.shape_cast %2 : vector<1x16x128xbf16> to vector<16x128xbf16>
    %c2 = arith.constant 2 : index
    %c0_4 = arith.constant 0 : index
    %4 = vector.load %arg8[%c2, %c0_4] : memref<20x128xbf16, #tpu.memory_space<vmem>>, vector<16x128xbf16>
    tpu.vector_store %arg8[%c2, %c0_4], %3 {strides = array<i32>} : memref<20x128xbf16, #tpu.memory_space<vmem>>, vector<16x128xbf16>,
    %c0_5 = arith.constant 0 : index
    %c0_6 = arith.constant 0 : index
    %5 = vector.load %arg4[%c0_5, %c0_6] : memref<1x128xf32, #tpu.memory_space<vmem>>, vector<1x128xf32>
    %cst_7 = arith.constant 0.000000e+00 : f32
    %6 = vector.broadcast %cst_7 : f32 to vector<16x128xf32>
    %c0_8 = arith.constant 0 : index
    %c0_9 = arith.constant 0 : index
    %7 = vector.load %arg8[%c0_8, %c0_9] : memref<20x128xbf16, #tpu.memory_space<vmem>>, vector<16x128xbf16>
    %c0_10 = arith.constant 0 : index
    %c0_11 = arith.constant 0 : index
    %c0_12 = arith.constant 0 : index
    %8 = vector.load %arg3[%c0_10, %c0_11, %c0_12] : memref<5x128x128xbf16, #tpu.memory_space<vmem>>, vector<1x128x128xbf16>
    %9 = vector.shape_cast %8 : vector<1x128x128xbf16> to vector<128x128xbf16>
    %cst_13 = arith.constant dense<0.000000e+00> : vector<16x128xf32>
    %10 = tpu.matmul %7, %9, %cst_13 {dimension_numbers = #tpu.dot_dimension_numbers<[1], [0], [0], [1], [0, 0, 1, 1], [], []>} : vector<16x128xbf16>, vector<128x128xbf16>, vector<16x128xf32> -> vector<16x128xf32>
    %11 = arith.addf %6, %10 : vector<16x128xf32>
    %c1 = arith.constant 1 : index
    %c0_14 = arith.constant 0 : index
    %12 = vector.load %arg8[%c1, %c0_14] : memref<20x128xbf16, #tpu.memory_space<vmem>>, vector<16x128xbf16>
    %c1_15 = arith.constant 1 : index
    %c0_16 = arith.constant 0 : index
    %c0_17 = arith.constant 0 : index
    %13 = vector.load %arg3[%c1_15, %c0_16, %c0_17] : memref<5x128x128xbf16, #tpu.memory_space<vmem>>, vector<1x128x128xbf16>
    %14 = vector.shape_cast %13 : vector<1x128x128xbf16> to vector<128x128xbf16>
    %cst_18 = arith.constant dense<0.000000e+00> : vector<16x128xf32>
    %15 = tpu.matmul %12, %14, %cst_18 {dimension_numbers = #tpu.dot_dimension_numbers<[1], [0], [0], [1], [0, 0, 1, 1], [], []>} : vector<16x128xbf16>, vector<128x128xbf16>, vector<16x128xf32> -> vector<16x128xf32>
    %16 = arith.addf %11, %15 : vector<16x128xf32>
    %c2_19 = arith.constant 2 : index
    %c0_20 = arith.constant 0 : index
    %17 = vector.load %arg8[%c2_19, %c0_20] : memref<20x128xbf16, #tpu.memory_space<vmem>>, vector<16x128xbf16>
    %c2_21 = arith.constant 2 : index
    %c0_22 = arith.constant 0 : index
    %c0_23 = arith.constant 0 : index
    %18 = vector.load %arg3[%c2_21, %c0_22, %c0_23] : memref<5x128x128xbf16, #tpu.memory_space<vmem>>, vector<1x128x128xbf16>
    %19 = vector.shape_cast %18 : vector<1x128x128xbf16> to vector<128x128xbf16>
    %cst_24 = arith.constant dense<0.000000e+00> : vector<16x128xf32>
    %20 = tpu.matmul %17, %19, %cst_24 {dimension_numbers = #tpu.dot_dimension_numbers<[1], [0], [0], [1], [0, 0, 1, 1], [], []>} : vector<16x128xbf16>, vector<128x128xbf16>, vector<16x128xf32> -> vector<16x128xf32>
    %21 = arith.addf %16, %20 : vector<16x128xf32>
    %c3 = arith.constant 3 : index
    %c0_25 = arith.constant 0 : index
    %22 = vector.load %arg8[%c3, %c0_25] : memref<20x128xbf16, #tpu.memory_space<vmem>>, vector<16x128xbf16>
    %c3_26 = arith.constant 3 : index
    %c0_27 = arith.constant 0 : index
    %c0_28 = arith.constant 0 : index
    %23 = vector.load %arg3[%c3_26, %c0_27, %c0_28] : memref<5x128x128xbf16, #tpu.memory_space<vmem>>, vector<1x128x128xbf16>
    %24 = vector.shape_cast %23 : vector<1x128x128xbf16> to vector<128x128xbf16>
    %cst_29 = arith.constant dense<0.000000e+00> : vector<16x128xf32>
    %25 = tpu.matmul %22, %24, %cst_29 {dimension_numbers = #tpu.dot_dimension_numbers<[1], [0], [0], [1], [0, 0, 1, 1], [], []>} : vector<16x128xbf16>, vector<128x128xbf16>, vector<16x128xf32> -> vector<16x128xf32>
    %26 = arith.addf %21, %25 : vector<16x128xf32>
    %c4 = arith.constant 4 : index
    %c0_30 = arith.constant 0 : index
    %27 = vector.load %arg8[%c4, %c0_30] : memref<20x128xbf16, #tpu.memory_space<vmem>>, vector<16x128xbf16>
    %c4_31 = arith.constant 4 : index
    %c0_32 = arith.constant 0 : index
    %c0_33 = arith.constant 0 : index
    %28 = vector.load %arg3[%c4_31, %c0_32, %c0_33] : memref<5x128x128xbf16, #tpu.memory_space<vmem>>, vector<1x128x128xbf16>
    %29 = vector.shape_cast %28 : vector<1x128x128xbf16> to vector<128x128xbf16>
    %cst_34 = arith.constant dense<0.000000e+00> : vector<16x128xf32>
    %30 = tpu.matmul %27, %29, %cst_34 {dimension_numbers = #tpu.dot_dimension_numbers<[1], [0], [0], [1], [0, 0, 1, 1], [], []>} : vector<16x128xbf16>, vector<128x128xbf16>, vector<16x128xf32> -> vector<16x128xf32>
    %31 = arith.addf %26, %30 : vector<16x128xf32>
    %32 = vector.broadcast %5 : vector<1x128xf32> to vector<16x128xf32>
    %33 = arith.addf %31, %32 : vector<16x128xf32>
    %cst_35 = arith.constant 0.000000e+00 : f32
    %34 = vector.broadcast %cst_35 : f32 to vector<16x128xf32>
    %35 = arith.maximumf %33, %34 : vector<16x128xf32>
    %36 = arith.truncf %35 : vector<16x128xf32> to vector<16x128xbf16>
    %c2_36 = arith.constant 2 : index
    %c0_37 = arith.constant 0 : index
    %37 = vector.load %arg8[%c2_36, %c0_37] : memref<20x128xbf16, #tpu.memory_space<vmem>>, vector<16x128xbf16>
    tpu.vector_store %arg8[%c2_36, %c0_37], %36 {strides = array<i32>} : memref<20x128xbf16, #tpu.memory_space<vmem>>, vector<16x128xbf16>,
    %cst_38 = arith.constant 0.000000e+00 : f32
    %38 = vector.broadcast %cst_38 : f32 to vector<16x128xf32>
    %c0_39 = arith.constant 0 : index
    %c0_40 = arith.constant 0 : index
    %39 = vector.load %arg8[%c0_39, %c0_40] : memref<20x128xbf16, #tpu.memory_space<vmem>>, vector<16x128xbf16>
    %c0_41 = arith.constant 0 : index
    %c0_42 = arith.constant 0 : index
    %c0_43 = arith.constant 0 : index
    %40 = vector.load %arg3[%c0_41, %c0_42, %c0_43] : memref<5x128x128xbf16, #tpu.memory_space<vmem>>, vector<1x128x128xbf16>
    %41 = vector.shape_cast %40 : vector<1x128x128xbf16> to vector<128x128xbf16>
    %cst_44 = arith.constant dense<0.000000e+00> : vector<16x128xf32>
    %42 = tpu.matmul %39, %41, %cst_44 {dimension_numbers = #tpu.dot_dimension_numbers<[1], [0], [0], [1], [0, 0, 1, 1], [], []>} : vector<16x128xbf16>, vector<128x128xbf16>, vector<16x128xf32> -> vector<16x128xf32>
    %43 = arith.addf %38, %42 : vector<16x128xf32>
    %c1_45 = arith.constant 1 : index
    %c0_46 = arith.constant 0 : index
    %44 = vector.load %arg8[%c1_45, %c0_46] : memref<20x128xbf16, #tpu.memory_space<vmem>>, vector<16x128xbf16>
    %c1_47 = arith.constant 1 : index
    %c0_48 = arith.constant 0 : index
    %c0_49 = arith.constant 0 : index
    %45 = vector.load %arg3[%c1_47, %c0_48, %c0_49] : memref<5x128x128xbf16, #tpu.memory_space<vmem>>, vector<1x128x128xbf16>
    %46 = vector.shape_cast %45 : vector<1x128x128xbf16> to vector<128x128xbf16>
    %cst_50 = arith.constant dense<0.000000e+00> : vector<16x128xf32>
    %47 = tpu.matmul %44, %46, %cst_50 {dimension_numbers = #tpu.dot_dimension_numbers<[1], [0], [0], [1], [0, 0, 1, 1], [], []>} : vector<16x128xbf16>, vector<128x128xbf16>, vector<16x128xf32> -> vector<16x128xf32>
    %48 = arith.addf %43, %47 : vector<16x128xf32>
    %c2_51 = arith.constant 2 : index
    %c0_52 = arith.constant 0 : index
    %49 = vector.load %arg8[%c2_51, %c0_52] : memref<20x128xbf16, #tpu.memory_space<vmem>>, vector<16x128xbf16>
    %c2_53 = arith.constant 2 : index
    %c0_54 = arith.constant 0 : index
    %c0_55 = arith.constant 0 : index
    %50 = vector.load %arg3[%c2_53, %c0_54, %c0_55] : memref<5x128x128xbf16, #tpu.memory_space<vmem>>, vector<1x128x128xbf16>
    %51 = vector.shape_cast %50 : vector<1x128x128xbf16> to vector<128x128xbf16>
    %cst_56 = arith.constant dense<0.000000e+00> : vector<16x128xf32>
    %52 = tpu.matmul %49, %51, %cst_56 {dimension_numbers = #tpu.dot_dimension_numbers<[1], [0], [0], [1], [0, 0, 1, 1], [], []>} : vector<16x128xbf16>, vector<128x128xbf16>, vector<16x128xf32> -> vector<16x128xf32>
    %53 = arith.addf %48, %52 : vector<16x128xf32>
    %c3_57 = arith.constant 3 : index
    %c0_58 = arith.constant 0 : index
    %54 = vector.load %arg8[%c3_57, %c0_58] : memref<20x128xbf16, #tpu.memory_space<vmem>>, vector<16x128xbf16>
    %c3_59 = arith.constant 3 : index
    %c0_60 = arith.constant 0 : index
    %c0_61 = arith.constant 0 : index
    %55 = vector.load %arg3[%c3_59, %c0_60, %c0_61] : memref<5x128x128xbf16, #tpu.memory_space<vmem>>, vector<1x128x128xbf16>
    %56 = vector.shape_cast %55 : vector<1x128x128xbf16> to vector<128x128xbf16>
    %cst_62 = arith.constant dense<0.000000e+00> : vector<16x128xf32>
    %57 = tpu.matmul %54, %56, %cst_62 {dimension_numbers = #tpu.dot_dimension_numbers<[1], [0], [0], [1], [0, 0, 1, 1], [], []>} : vector<16x128xbf16>, vector<128x128xbf16>, vector<16x128xf32> -> vector<16x128xf32>
    %58 = arith.addf %53, %57 : vector<16x128xf32>
    %c4_63 = arith.constant 4 : index
    %c0_64 = arith.constant 0 : index
    %59 = vector.load %arg8[%c4_63, %c0_64] : memref<20x128xbf16, #tpu.memory_space<vmem>>, vector<16x128xbf16>
    %c4_65 = arith.constant 4 : index
    %c0_66 = arith.constant 0 : index
    %c0_67 = arith.constant 0 : index
    %60 = vector.load %arg3[%c4_65, %c0_66, %c0_67] : memref<5x128x128xbf16, #tpu.memory_space<vmem>>, vector<1x128x128xbf16>
    %61 = vector.shape_cast %60 : vector<1x128x128xbf16> to vector<128x128xbf16>
    %cst_68 = arith.constant dense<0.000000e+00> : vector<16x128xf32>
    %62 = tpu.matmul %59, %61, %cst_68 {dimension_numbers = #tpu.dot_dimension_numbers<[1], [0], [0], [1], [0, 0, 1, 1], [], []>} : vector<16x128xbf16>, vector<128x128xbf16>, vector<16x128xf32> -> vector<16x128xf32>
    %63 = arith.addf %58, %62 : vector<16x128xf32>
    %64 = vector.broadcast %5 : vector<1x128xf32> to vector<16x128xf32>
    %65 = arith.addf %63, %64 : vector<16x128xf32>
    %cst_69 = arith.constant 0.000000e+00 : f32
    %66 = vector.broadcast %cst_69 : f32 to vector<16x128xf32>
    %67 = arith.maximumf %65, %66 : vector<16x128xf32>
    %68 = arith.truncf %67 : vector<16x128xf32> to vector<16x128xbf16>
    %c2_70 = arith.constant 2 : index
    %c0_71 = arith.constant 0 : index
    %69 = vector.load %arg8[%c2_70, %c0_71] : memref<20x128xbf16, #tpu.memory_space<vmem>>, vector<16x128xbf16>
    tpu.vector_store %arg8[%c2_70, %c0_71], %68 {strides = array<i32>} : memref<20x128xbf16, #tpu.memory_space<vmem>>, vector<16x128xbf16>,
    %cst_72 = arith.constant 0.000000e+00 : f32
    %70 = vector.broadcast %cst_72 : f32 to vector<16x128xf32>
    %c0_73 = arith.constant 0 : index
    %c0_74 = arith.constant 0 : index
    %71 = vector.load %arg8[%c0_73, %c0_74] : memref<20x128xbf16, #tpu.memory_space<vmem>>, vector<16x128xbf16>
    %c0_75 = arith.constant 0 : index
    %c0_76 = arith.constant 0 : index
    %c0_77 = arith.constant 0 : index
    %72 = vector.load %arg3[%c0_75, %c0_76, %c0_77] : memref<5x128x128xbf16, #tpu.memory_space<vmem>>, vector<1x128x128xbf16>
    %73 = vector.shape_cast %72 : vector<1x128x128xbf16> to vector<128x128xbf16>
    %cst_78 = arith.constant dense<0.000000e+00> : vector<16x128xf32>
    %74 = tpu.matmul %71, %73, %cst_78 {dimension_numbers = #tpu.dot_dimension_numbers<[1], [0], [0], [1], [0, 0, 1, 1], [], []>} : vector<16x128xbf16>, vector<128x128xbf16>, vector<16x128xf32> -> vector<16x128xf32>
    %75 = arith.addf %70, %74 : vector<16x128xf32>
    %c1_79 = arith.constant 1 : index
    %c0_80 = arith.constant 0 : index
    %76 = vector.load %arg8[%c1_79, %c0_80] : memref<20x128xbf16, #tpu.memory_space<vmem>>, vector<16x128xbf16>
    %c1_81 = arith.constant 1 : index
    %c0_82 = arith.constant 0 : index
    %c0_83 = arith.constant 0 : index
    %77 = vector.load %arg3[%c1_81, %c0_82, %c0_83] : memref<5x128x128xbf16, #tpu.memory_space<vmem>>, vector<1x128x128xbf16>
    %78 = vector.shape_cast %77 : vector<1x128x128xbf16> to vector<128x128xbf16>
    %cst_84 = arith.constant dense<0.000000e+00> : vector<16x128xf32>
    %79 = tpu.matmul %76, %78, %cst_84 {dimension_numbers = #tpu.dot_dimension_numbers<[1], [0], [0], [1], [0, 0, 1, 1], [], []>} : vector<16x128xbf16>, vector<128x128xbf16>, vector<16x128xf32> -> vector<16x128xf32>
    %80 = arith.addf %75, %79 : vector<16x128xf32>
    %c2_85 = arith.constant 2 : index
    %c0_86 = arith.constant 0 : index
    %81 = vector.load %arg8[%c2_85, %c0_86] : memref<20x128xbf16, #tpu.memory_space<vmem>>, vector<16x128xbf16>
    %c2_87 = arith.constant 2 : index
    %c0_88 = arith.constant 0 : index
    %c0_89 = arith.constant 0 : index
    %82 = vector.load %arg3[%c2_87, %c0_88, %c0_89] : memref<5x128x128xbf16, #tpu.memory_space<vmem>>, vector<1x128x128xbf16>
    %83 = vector.shape_cast %82 : vector<1x128x128xbf16> to vector<128x128xbf16>
    %cst_90 = arith.constant dense<0.000000e+00> : vector<16x128xf32>
    %84 = tpu.matmul %81, %83, %cst_90 {dimension_numbers = #tpu.dot_dimension_numbers<[1], [0], [0], [1], [0, 0, 1, 1], [], []>} : vector<16x128xbf16>, vector<128x128xbf16>, vector<16x128xf32> -> vector<16x128xf32>
    %85 = arith.addf %80, %84 : vector<16x128xf32>
    %c3_91 = arith.constant 3 : index
    %c0_92 = arith.constant 0 : index
    %86 = vector.load %arg8[%c3_91, %c0_92] : memref<20x128xbf16, #tpu.memory_space<vmem>>, vector<16x128xbf16>
    %c3_93 = arith.constant 3 : index
    %c0_94 = arith.constant 0 : index
    %c0_95 = arith.constant 0 : index
    %87 = vector.load %arg3[%c3_93, %c0_94, %c0_95] : memref<5x128x128xbf16, #tpu.memory_space<vmem>>, vector<1x128x128xbf16>
    %88 = vector.shape_cast %87 : vector<1x128x128xbf16> to vector<128x128xbf16>
    %cst_96 = arith.constant dense<0.000000e+00> : vector<16x128xf32>
    %89 = tpu.matmul %86, %88, %cst_96 {dimension_numbers = #tpu.dot_dimension_numbers<[1], [0], [0], [1], [0, 0, 1, 1], [], []>} : vector<16x128xbf16>, vector<128x128xbf16>, vector<16x128xf32> -> vector<16x128xf32>
    %90 = arith.addf %85, %89 : vector<16x128xf32>
    %c4_97 = arith.constant 4 : index
    %c0_98 = arith.constant 0 : index
    %91 = vector.load %arg8[%c4_97, %c0_98] : memref<20x128xbf16, #tpu.memory_space<vmem>>, vector<16x128xbf16>
    %c4_99 = arith.constant 4 : index
    %c0_100 = arith.constant 0 : index
    %c0_101 = arith.constant 0 : index
    %92 = vector.load %arg3[%c4_99, %c0_100, %c0_101] : memref<5x128x128xbf16, #tpu.memory_space<vmem>>, vector<1x128x128xbf16>
    %93 = vector.shape_cast %92 : vector<1x128x128xbf16> to vector<128x128xbf16>
    %cst_102 = arith.constant dense<0.000000e+00> : vector<16x128xf32>
    %94 = tpu.matmul %91, %93, %cst_102 {dimension_numbers = #tpu.dot_dimension_numbers<[1], [0], [0], [1], [0, 0, 1, 1], [], []>} : vector<16x128xbf16>, vector<128x128xbf16>, vector<16x128xf32> -> vector<16x128xf32>
    %95 = arith.addf %90, %94 : vector<16x128xf32>
    %96 = vector.broadcast %5 : vector<1x128xf32> to vector<16x128xf32>
    %97 = arith.addf %95, %96 : vector<16x128xf32>
    %cst_103 = arith.constant 0.000000e+00 : f32
    %98 = vector.broadcast %cst_103 : f32 to vector<16x128xf32>
    %99 = arith.maximumf %97, %98 : vector<16x128xf32>
    %100 = arith.truncf %99 : vector<16x128xf32> to vector<16x128xbf16>
    %c2_104 = arith.constant 2 : index
    %c0_105 = arith.constant 0 : index
    %101 = vector.load %arg8[%c2_104, %c0_105] : memref<20x128xbf16, #tpu.memory_space<vmem>>, vector<16x128xbf16>
    tpu.vector_store %arg8[%c2_104, %c0_105], %100 {strides = array<i32>} : memref<20x128xbf16, #tpu.memory_space<vmem>>, vector<16x128xbf16>,
    %cst_106 = arith.constant 0.000000e+00 : f32
    %102 = vector.broadcast %cst_106 : f32 to vector<16x16xf32>
    %c0_107 = arith.constant 0 : index
    %c0_108 = arith.constant 0 : index
    %c0_109 = arith.constant 0 : index
    %103 = vector.load %arg5[%c0_107, %c0_108, %c0_109] : memref<5x16x128xbf16, #tpu.memory_space<vmem>>, vector<1x16x128xbf16>
    %104 = vector.shape_cast %103 : vector<1x16x128xbf16> to vector<16x128xbf16>
    %c0_110 = arith.constant 0 : index
    %c0_111 = arith.constant 0 : index
    %105 = vector.load %arg8[%c0_110, %c0_111] : memref<20x128xbf16, #tpu.memory_space<vmem>>, vector<16x128xbf16>
    %cst_112 = arith.constant dense<0.000000e+00> : vector<16x16xf32>
    %106 = tpu.matmul %104, %105, %cst_112 {dimension_numbers = #tpu.dot_dimension_numbers<[1], [1], [0], [0], [0, 0, 1, 0], [], []>} : vector<16x128xbf16>, vector<16x128xbf16>, vector<16x16xf32> -> vector<16x16xf32>
    %107 = arith.addf %102, %106 : vector<16x16xf32>
    %c1_113 = arith.constant 1 : index
    %c0_114 = arith.constant 0 : index
    %c0_115 = arith.constant 0 : index
    %108 = vector.load %arg5[%c1_113, %c0_114, %c0_115] : memref<5x16x128xbf16, #tpu.memory_space<vmem>>, vector<1x16x128xbf16>
    %109 = vector.shape_cast %108 : vector<1x16x128xbf16> to vector<16x128xbf16>
    %c1_116 = arith.constant 1 : index
    %c0_117 = arith.constant 0 : index
    %110 = vector.load %arg8[%c1_116, %c0_117] : memref<20x128xbf16, #tpu.memory_space<vmem>>, vector<16x128xbf16>
    %cst_118 = arith.constant dense<0.000000e+00> : vector<16x16xf32>
    %111 = tpu.matmul %109, %110, %cst_118 {dimension_numbers = #tpu.dot_dimension_numbers<[1], [1], [0], [0], [0, 0, 1, 0], [], []>} : vector<16x128xbf16>, vector<16x128xbf16>, vector<16x16xf32> -> vector<16x16xf32>
    %112 = arith.addf %107, %111 : vector<16x16xf32>
    %c2_119 = arith.constant 2 : index
    %c0_120 = arith.constant 0 : index
    %c0_121 = arith.constant 0 : index
    %113 = vector.load %arg5[%c2_119, %c0_120, %c0_121] : memref<5x16x128xbf16, #tpu.memory_space<vmem>>, vector<1x16x128xbf16>
    %114 = vector.shape_cast %113 : vector<1x16x128xbf16> to vector<16x128xbf16>
    %c2_122 = arith.constant 2 : index
    %c0_123 = arith.constant 0 : index
    %115 = vector.load %arg8[%c2_122, %c0_123] : memref<20x128xbf16, #tpu.memory_space<vmem>>, vector<16x128xbf16>
    %cst_124 = arith.constant dense<0.000000e+00> : vector<16x16xf32>
    %116 = tpu.matmul %114, %115, %cst_124 {dimension_numbers = #tpu.dot_dimension_numbers<[1], [1], [0], [0], [0, 0, 1, 0], [], []>} : vector<16x128xbf16>, vector<16x128xbf16>, vector<16x16xf32> -> vector<16x16xf32>
    %117 = arith.addf %112, %116 : vector<16x16xf32>
    %c3_125 = arith.constant 3 : index
    %c0_126 = arith.constant 0 : index
    %c0_127 = arith.constant 0 : index
    %118 = vector.load %arg5[%c3_125, %c0_126, %c0_127] : memref<5x16x128xbf16, #tpu.memory_space<vmem>>, vector<1x16x128xbf16>
    %119 = vector.shape_cast %118 : vector<1x16x128xbf16> to vector<16x128xbf16>
    %c3_128 = arith.constant 3 : index
    %c0_129 = arith.constant 0 : index
    %120 = vector.load %arg8[%c3_128, %c0_129] : memref<20x128xbf16, #tpu.memory_space<vmem>>, vector<16x128xbf16>
    %cst_130 = arith.constant dense<0.000000e+00> : vector<16x16xf32>
    %121 = tpu.matmul %119, %120, %cst_130 {dimension_numbers = #tpu.dot_dimension_numbers<[1], [1], [0], [0], [0, 0, 1, 0], [], []>} : vector<16x128xbf16>, vector<16x128xbf16>, vector<16x16xf32> -> vector<16x16xf32>
    %122 = arith.addf %117, %121 : vector<16x16xf32>
    %c4_131 = arith.constant 4 : index
    %c0_132 = arith.constant 0 : index
    %c0_133 = arith.constant 0 : index
    %123 = vector.load %arg5[%c4_131, %c0_132, %c0_133] : memref<5x16x128xbf16, #tpu.memory_space<vmem>>, vector<1x16x128xbf16>
    %124 = vector.shape_cast %123 : vector<1x16x128xbf16> to vector<16x128xbf16>
    %c4_134 = arith.constant 4 : index
    %c0_135 = arith.constant 0 : index
    %125 = vector.load %arg8[%c4_134, %c0_135] : memref<20x128xbf16, #tpu.memory_space<vmem>>, vector<16x128xbf16>
    %cst_136 = arith.constant dense<0.000000e+00> : vector<16x16xf32>
    %126 = tpu.matmul %124, %125, %cst_136 {dimension_numbers = #tpu.dot_dimension_numbers<[1], [1], [0], [0], [0, 0, 1, 0], [], []>} : vector<16x128xbf16>, vector<16x128xbf16>, vector<16x16xf32> -> vector<16x16xf32>
    %127 = arith.addf %122, %126 : vector<16x16xf32>
    %c0_137 = arith.constant 0 : index
    %c0_138 = arith.constant 0 : index
    %128 = vector.load %arg6[%c0_137, %c0_138] : memref<16x1xf32, #tpu.memory_space<vmem>>, vector<16x1xf32>
    %129 = vector.broadcast %128 : vector<16x1xf32> to vector<16x16xf32>
    %130 = arith.addf %127, %129 : vector<16x16xf32>
    %131 = vector.extract_strided_slice %130 {offsets = [0, 0], sizes = [8, 16], strides = [1, 1]} : vector<16x16xf32> to vector<8x16xf32>
    %132 = vector.extract_strided_slice %130 {offsets = [8, 0], sizes = [8, 16], strides = [1, 1]} : vector<16x16xf32> to vector<8x16xf32>
    %c0_139 = arith.constant 0 : index
    %c0_140 = arith.constant 0 : index
    %c0_141 = arith.constant 0 : index
    %133 = vector.load %arg2[%c0_139, %c0_140, %c0_141] : memref<1x8x16xf32, #tpu.memory_space<vmem>>, vector<1x8x16xf32>
    %134 = vector.shape_cast %133 : vector<1x8x16xf32> to vector<8x16xf32>
    %cst_142 = arith.constant dense<0.000000e+00> : vector<8xf32>
    %135 = vector.multi_reduction <add>, %134, %cst_142 [1] : vector<8x16xf32> to vector<8xf32>
    %136 = vector.shape_cast %135 : vector<8xf32> to vector<8x1xf32>
    %cst_143 = arith.constant 1.600000e+01 : f32
    %137 = vector.broadcast %cst_143 : f32 to vector<8x1xf32>
    %138 = arith.divf %136, %137 : vector<8x1xf32>
    %139 = vector.broadcast %138 : vector<8x1xf32> to vector<8x16xf32>
    %140 = arith.subf %134, %139 : vector<8x16xf32>
    %141 = arith.mulf %140, %140 : vector<8x16xf32>
    %cst_144 = arith.constant dense<0.000000e+00> : vector<8xf32>
    %142 = vector.multi_reduction <add>, %141, %cst_144 [1] : vector<8x16xf32> to vector<8xf32>
    %143 = vector.shape_cast %142 : vector<8xf32> to vector<8x1xf32>
    %cst_145 = arith.constant 1.600000e+01 : f32
    %144 = vector.broadcast %cst_145 : f32 to vector<8x1xf32>
    %145 = arith.divf %143, %144 : vector<8x1xf32>
    %cst_146 = arith.constant 9.99999974E-6 : f32
    %146 = vector.broadcast %cst_146 : f32 to vector<8x1xf32>
    %147 = arith.addf %145, %146 : vector<8x1xf32>
    %148 = math.rsqrt %147 : vector<8x1xf32>
    %149 = vector.broadcast %148 : vector<8x1xf32> to vector<8x16xf32>
    %150 = arith.mulf %140, %149 : vector<8x16xf32>
    %cst_147 = arith.constant 1.000000e+00 : f32
    %151 = vector.broadcast %cst_147 : f32 to vector<8x16xf32>
    %152 = arith.addf %151, %131 : vector<8x16xf32>
    %153 = arith.mulf %150, %152 : vector<8x16xf32>
    %154 = arith.addf %153, %132 : vector<8x16xf32>
    %c0_148 = arith.constant 0 : index
    %c0_149 = arith.constant 0 : index
    %c0_150 = arith.constant 0 : index
    %155 = vector.load %arg7[%c0_148, %c0_149, %c0_150] : memref<1x8x16xf32, #tpu.memory_space<vmem>>, vector<1x8x16xf32>
    %156 = vector.shape_cast %155 : vector<1x8x16xf32> to vector<8x16xf32>
    %157 = vector.shape_cast %154 : vector<8x16xf32> to vector<1x8x16xf32>
    tpu.vector_store %arg7[%c0_148, %c0_149, %c0_150], %157 {strides = array<i32>} : memref<1x8x16xf32, #tpu.memory_space<vmem>>, vector<1x8x16xf32>,
    return
  }
  func.func @transform_0(%arg0: i32) -> (i32, i32, i32) {
    %c0_i32 = arith.constant 0 : i32
    %c0_i32_0 = arith.constant 0 : i32
    %c0_i32_1 = arith.constant 0 : i32
    return %arg0, %c0_i32, %c0_i32_0 : i32, i32, i32
  }
  func.func @transform_1(%arg0: i32) -> (i32, i32, i32) {
    %c0_i32 = arith.constant 0 : i32
    %c0_i32_0 = arith.constant 0 : i32
    %c0_i32_1 = arith.constant 0 : i32
    return %arg0, %c0_i32, %c0_i32_0 : i32, i32, i32
  }
  func.func @transform_2(%arg0: i32) -> (i32, i32, i32) {
    %c0_i32 = arith.constant 0 : i32
    %c0_i32_0 = arith.constant 0 : i32
    %c0_i32_1 = arith.constant 0 : i32
    %c0_i32_2 = arith.constant 0 : i32
    return %c0_i32, %c0_i32_0, %c0_i32_1 : i32, i32, i32
  }
  func.func @transform_3(%arg0: i32) -> (i32, i32) {
    %c0_i32 = arith.constant 0 : i32
    %c0_i32_0 = arith.constant 0 : i32
    %c0_i32_1 = arith.constant 0 : i32
    return %c0_i32, %c0_i32_0 : i32, i32
  }
  func.func @transform_4(%arg0: i32) -> (i32, i32, i32) {
    %c0_i32 = arith.constant 0 : i32
    %c0_i32_0 = arith.constant 0 : i32
    %c0_i32_1 = arith.constant 0 : i32
    %c0_i32_2 = arith.constant 0 : i32
    return %c0_i32, %c0_i32_0, %c0_i32_1 : i32, i32, i32
  }
  func.func @transform_5(%arg0: i32) -> (i32, i32) {
    %c0_i32 = arith.constant 0 : i32
    %c0_i32_0 = arith.constant 0 : i32
    %c0_i32_1 = arith.constant 0 : i32
    return %c0_i32, %c0_i32_0 : i32, i32
  }
  func.func @transform_6(%arg0: i32) -> (i32, i32, i32) {
    %c0_i32 = arith.constant 0 : i32
    %c0_i32_0 = arith.constant 0 : i32
    %c0_i32_1 = arith.constant 0 : i32
    return %arg0, %c0_i32, %c0_i32_0 : i32, i32, i32
  }
}

</mosaic_0001>

<llo_original>
// kernel: tfan_1d_forward.1
$region0: #{tfan_1d_forward.1}
  #allocation0 [shape = 'u32[]', space=smem, size = 0x4, offset = 0x4, fixed_abs, tag = 'smem constant byte address 0x4 - core index']
  #allocation1 [shape = 'u32[72,128]{1,0:T(1,128)}', space=vmem, size = 0x9000, scoped, tag = 'internal scratch']
  #allocation2 [shape = 'bf16[20,128]{1,0:T(8,128)(2,1)}', space=vmem, size = 0x1800, scoped, tag = 'scratch operand']
  %s0 = inlined_call_operand.vmem [shape: bf16[2,16,128], index: 0, kind: input, shape index: {}]
  %s1 = inlined_call_operand.vmem [shape: f32[2,8,16], index: 1, kind: input, shape index: {}]
  %s2 = inlined_call_operand.vmem [shape: bf16[5,128,128], index: 2, kind: input, shape index: {}]
  %s3 = inlined_call_operand.vmem [shape: f32[1,128], index: 3, kind: input, shape index: {}]
  %s4 = inlined_call_operand.vmem [shape: bf16[5,16,128], index: 4, kind: input, shape index: {}]
  %s5 = inlined_call_operand.vmem [shape: f32[16,1], index: 5, kind: input, shape index: {}]
  %s6 = inlined_call_operand.hbm [shape: f32[2,8,16], index: 6, kind: output, shape index: {}]
  %s7 = sld [smem:[#allocation0]]
  $region57: #{tfan_1d_forward.1} parent=0
    _
  %s9 = ssub.s32 1, %s7
  %s10 = scalar_select 0, %s9, %s7
  $region1: #{tfan_1d_forward.1} parent=0
    #allocation3 [shape = 'u8[8192]{0}', space=vmem, size = 0x2000, scoped, tag = 'output window, operand 0']
    #allocation4 [shape = 's32[2]{0}', space=sflag, size = 0x8, scoped, tag = 'scoped memory for tfan_1d_forward.1']
    %11 = vsyncpa [#allocation4], 0
    %s12 = scalar_lea.sflag [#allocation4], 1
    %13 = vsyncpa %s12, 0
    loop: start=0, step=1, limit=4
    $region2: #{tfan_1d_forward.1} parent=1 // loop_pre_header
      _
    $region3: #{tfan_1d_forward.1} parent=1 // loop_header
      %s15 = sphi 0, %s19
      %p16 = scmp.ge.s32.totalorder %s15, 4
      %s25 = sphi 0, %s27
      %s28 = sphi 0, %s25
      %s29 = sphi 0, %s28
      %s45 = sphi 0, %s29
      %s51 = sphi 0, %s53
      %s54 = sphi 0, %s51
      %s55 = sphi 0, %s54
      %s71 = sphi 0, %s55
      %s75 = sphi 0, %s75
      %s77 = sphi 0, %s75
      %s78 = sphi 0, %s77
      %s92 = sphi 0, %s78
      %s96 = sphi 0, %s96
      %s98 = sphi 0, %s96
      %s99 = sphi 0, %s98
      %s113 = sphi 0, %s99
      %s117 = sphi 0, %s117
      %s119 = sphi 0, %s117
      %s120 = sphi 0, %s119
      %s134 = sphi 0, %s120
      %s138 = sphi 0, %s138
      %s140 = sphi 0, %s138
      %s141 = sphi 0, %s140
      %s155 = sphi 0, %s141
      %s161 = sphi 0, %s163
      %s164 = sphi 0, %s161
      %s165 = sphi 0, %s164
      %s181 = sphi 0, %s165
    $region4: #{tfan_1d_forward.1} parent=1 // loop_header_branch
      %18 = sbr.rel (%p16) target = $region8
    $region5: #{tfan_1d_forward.1} parent=1 // loop_body
      %s20 = ssub.s32 %s15, 1
      %s21 = ssub.s32 %s15, 2
      %s22 = sadd.s32 %s15, 1
      %s23 = ssub.s32 %s15, %s22
      %p24 = scmp.eq.s32.totalorder %s23, 0
      %s26 = sadd.s32 %s25, 1
      %s27 = scalar_select %p24, %s25, %s26
      %p30 = pneg %p24
      %p31 = scmp.eq.s32.totalorder %s15, 1
      %p32 = por %p30, %p31
      %p33 = scmp.ne.s32.totalorder %s25, %s28
      %p34 = scmp.eq.s32.totalorder %s15, 0
      %p35 = por %p33, %p34
      %p36 = scmp.ne.s32.totalorder %s25, %s28
      %p37 = scmp.eq.s32.totalorder %s20, 1
      %p38 = por %p36, %p37
      %p39 = scmp.ne.s32.totalorder %s28, %s29
      %p40 = scmp.eq.s32.totalorder %s20, 0
      %p41 = por %p39, %p40
      %p42 = scmp.ne.s32.totalorder %s28, %s29
      %p43 = scmp.eq.s32.totalorder %s21, 1
      %p44 = por %p42, %p43
      %p46 = scmp.ne.s32.totalorder %s29, %s45
      %p47 = scmp.eq.s32.totalorder %s21, 0
      %p48 = por %p46, %p47
      %s49 = ssub.s32 %s15, %s22
      %p50 = scmp.eq.s32.totalorder %s49, 0
      %s52 = sadd.s32 %s51, 1
      %s53 = scalar_select %p50, %s51, %s52
      %p56 = pneg %p50
      %p57 = scmp.eq.s32.totalorder %s15, 1
      %p58 = por %p56, %p57
      %p59 = scmp.ne.s32.totalorder %s51, %s54
      %p60 = scmp.eq.s32.totalorder %s15, 0
      %p61 = por %p59, %p60
      %p62 = scmp.ne.s32.totalorder %s51, %s54
      %p63 = scmp.eq.s32.totalorder %s20, 1
      %p64 = por %p62, %p63
      %p65 = scmp.ne.s32.totalorder %s54, %s55
      %p66 = scmp.eq.s32.totalorder %s20, 0
      %p67 = por %p65, %p66
      %p68 = scmp.ne.s32.totalorder %s54, %s55
      %p69 = scmp.eq.s32.totalorder %s21, 1
      %p70 = por %p68, %p69
      %p72 = scmp.ne.s32.totalorder %s55, %s71
      %p73 = scmp.eq.s32.totalorder %s21, 0
      %p74 = por %p72, %p73
      %s76 = sadd.s32 %s75, 1
      %p79 = scmp.eq.s32.totalorder %s15, 1
      %p80 = scmp.ne.s32.totalorder %s75, %s77
      %p81 = scmp.eq.s32.totalorder %s15, 0
      %p82 = por %p80, %p81
      %p83 = scmp.ne.s32.totalorder %s75, %s77
      %p84 = scmp.eq.s32.totalorder %s20, 1
      %p85 = por %p83, %p84
      %p86 = scmp.ne.s32.totalorder %s77, %s78
      %p87 = scmp.eq.s32.totalorder %s20, 0
      %p88 = por %p86, %p87
      %p89 = scmp.ne.s32.totalorder %s77, %s78
      %p90 = scmp.eq.s32.totalorder %s21, 1
      %p91 = por %p89, %p90
      %p93 = scmp.ne.s32.totalorder %s78, %s92
      %p94 = scmp.eq.s32.totalorder %s21, 0
      %p95 = por %p93, %p94
      %s97 = sadd.s32 %s96, 1
      %p100 = scmp.eq.s32.totalorder %s15, 1
      %p101 = scmp.ne.s32.totalorder %s96, %s98
      %p102 = scmp.eq.s32.totalorder %s15, 0
      %p103 = por %p101, %p102
      %p104 = scmp.ne.s32.totalorder %s96, %s98
      %p105 = scmp.eq.s32.totalorder %s20, 1
      %p106 = por %p104, %p105
      %p107 = scmp.ne.s32.totalorder %s98, %s99
      %p108 = scmp.eq.s32.totalorder %s20, 0
      %p109 = por %p107, %p108
      %p110 = scmp.ne.s32.totalorder %s98, %s99
      %p111 = scmp.eq.s32.totalorder %s21, 1
      %p112 = por %p110, %p111
      %p114 = scmp.ne.s32.totalorder %s99, %s113
      %p115 = scmp.eq.s32.totalorder %s21, 0
      %p116 = por %p114, %p115
      %s118 = sadd.s32 %s117, 1
      %p121 = scmp.eq.s32.totalorder %s15, 1
      %p122 = scmp.ne.s32.totalorder %s117, %s119
      %p123 = scmp.eq.s32.totalorder %s15, 0
      %p124 = por %p122, %p123
      %p125 = scmp.ne.s32.totalorder %s117, %s119
      %p126 = scmp.eq.s32.totalorder %s20, 1
      %p127 = por %p125, %p126
      %p128 = scmp.ne.s32.totalorder %s119, %s120
      %p129 = scmp.eq.s32.totalorder %s20, 0
      %p130 = por %p128, %p129
      %p131 = scmp.ne.s32.totalorder %s119, %s120
      %p132 = scmp.eq.s32.totalorder %s21, 1
      %p133 = por %p131, %p132
      %p135 = scmp.ne.s32.totalorder %s120, %s134
      %p136 = scmp.eq.s32.totalorder %s21, 0
      %p137 = por %p135, %p136
      %s139 = sadd.s32 %s138, 1
      %p142 = scmp.eq.s32.totalorder %s15, 1
      %p143 = scmp.ne.s32.totalorder %s138, %s140
      %p144 = scmp.eq.s32.totalorder %s15, 0
      %p145 = por %p143, %p144
      %p146 = scmp.ne.s32.totalorder %s138, %s140
      %p147 = scmp.eq.s32.totalorder %s20, 1
      %p148 = por %p146, %p147
      %p149 = scmp.ne.s32.totalorder %s140, %s141
      %p150 = scmp.eq.s32.totalorder %s20, 0
      %p151 = por %p149, %p150
      %p152 = scmp.ne.s32.totalorder %s140, %s141
      %p153 = scmp.eq.s32.totalorder %s21, 1
      %p154 = por %p152, %p153
      %p156 = scmp.ne.s32.totalorder %s141, %s155
      %p157 = scmp.eq.s32.totalorder %s21, 0
      %p158 = por %p156, %p157
      %s159 = ssub.s32 %s15, %s22
      %p160 = scmp.eq.s32.totalorder %s159, 0
      %s162 = sadd.s32 %s161, 1
      %s163 = scalar_select %p160, %s161, %s162
      %p166 = pneg %p160
      %p167 = scmp.eq.s32.totalorder %s15, 1
      %p168 = por %p166, %p167
      %p169 = scmp.ne.s32.totalorder %s161, %s164
      %p170 = scmp.eq.s32.totalorder %s15, 0
      %p171 = por %p169, %p170
      %p172 = scmp.ne.s32.totalorder %s161, %s164
      %p173 = scmp.eq.s32.totalorder %s20, 1
      %p174 = por %p172, %p173
      %p175 = scmp.ne.s32.totalorder %s164, %s165
      %p176 = scmp.eq.s32.totalorder %s20, 0
      %p177 = por %p175, %p176
      %p178 = scmp.ne.s32.totalorder %s164, %s165
      %p179 = scmp.eq.s32.totalorder %s21, 1
      %p180 = por %p178, %p179
      %p182 = scmp.ne.s32.totalorder %s165, %s181
      %p183 = scmp.eq.s32.totalorder %s21, 0
      %p184 = por %p182, %p183
      %p185 = scmp.le.s32.totalorder 1, %s15
      %p186 = scmp.lt.s32.totalorder %s15, 3
      %p187 = pnand %p185, %p186
      %p188 = pneg %p187
      // Predicated region
      $region9: #{tfan_1d_forward.1} parent=5 // pred_check
        _
      $region10: #{tfan_1d_forward.1} parent=5 // pred_check_branch
        %190 = sbr.rel (%p187) target = $region12
      $region11: #{tfan_1d_forward.1} parent=5 // pred_region
        %s191 = ssub.s32 %s15, 1
        // Predicated region
        $region13: #{tfan_1d_forward.1} parent=11 // pred_check
          %p192 = pneg %p88
        $region14: #{tfan_1d_forward.1} parent=11 // pred_check_branch
          %194 = sbr.rel (%p192) target = $region16
        $region15: #{tfan_1d_forward.1} parent=11 // pred_region
          _
        $region16: #{tfan_1d_forward.1} parent=11 // pred_fallthru
          _
        // Predicated region
        $region17: #{tfan_1d_forward.1} parent=11 // pred_check
          %p195 = pneg %p109
        $region18: #{tfan_1d_forward.1} parent=11 // pred_check_branch
          %197 = sbr.rel (%p195) target = $region20
        $region19: #{tfan_1d_forward.1} parent=11 // pred_region
          _
        $region20: #{tfan_1d_forward.1} parent=11 // pred_fallthru
          _
        // Predicated region
        $region21: #{tfan_1d_forward.1} parent=11 // pred_check
          %p198 = pneg %p130
        $region22: #{tfan_1d_forward.1} parent=11 // pred_check_branch
          %200 = sbr.rel (%p198) target = $region24
        $region23: #{tfan_1d_forward.1} parent=11 // pred_region
          _
        $region24: #{tfan_1d_forward.1} parent=11 // pred_fallthru
          _
        // Predicated region
        $region25: #{tfan_1d_forward.1} parent=11 // pred_check
          %p201 = pneg %p151
        $region26: #{tfan_1d_forward.1} parent=11 // pred_check_branch
          %203 = sbr.rel (%p201) target = $region28
        $region27: #{tfan_1d_forward.1} parent=11 // pred_region
          _
        $region28: #{tfan_1d_forward.1} parent=11 // pred_fallthru
          _
      $region12: #{tfan_1d_forward.1} parent=5 // pred_fallthru
        _
      %p204 = scmp.lt.s32.totalorder %s15, 2
      // Predicated region
      $region29: #{tfan_1d_forward.1} parent=5 // pred_check
        %p205 = pneg %p204
      $region30: #{tfan_1d_forward.1} parent=5 // pred_check_branch
        %207 = sbr.rel (%p205) target = $region32
      $region31: #{tfan_1d_forward.1} parent=5 // pred_region
        // Predicated region
        $region33: #{tfan_1d_forward.1} parent=31 // pred_check
          %p208 = pneg %p35
        $region34: #{tfan_1d_forward.1} parent=31 // pred_check_branch
          %210 = sbr.rel (%p208) target = $region36
        $region35: #{tfan_1d_forward.1} parent=31 // pred_region
          %p211 = scmp.lt.s32.totalorder %s15, 1
          %s212 = scalar_select %p211, %s15, 1
          %s213 = smul.addr %s212, 2
          %s214 = smul.addr %s213, 4
          %s215 = scalar_lea.vmem %s0, %s214
        $region36: #{tfan_1d_forward.1} parent=31 // pred_fallthru
          _
        // Predicated region
        $region37: #{tfan_1d_forward.1} parent=31 // pred_check
          %p216 = pneg %p61
        $region38: #{tfan_1d_forward.1} parent=31 // pred_check_branch
          %218 = sbr.rel (%p216) target = $region40
        $region39: #{tfan_1d_forward.1} parent=31 // pred_region
          %p219 = scmp.lt.s32.totalorder %s15, 1
          %s220 = scalar_select %p219, %s15, 1
          %s221 = smul.addr %s220, 8
          %s222 = scalar_lea.vmem %s1, %s221
        $region40: #{tfan_1d_forward.1} parent=31 // pred_fallthru
          _
      $region32: #{tfan_1d_forward.1} parent=5 // pred_fallthru
        _
      %p223 = scmp.le.s32.totalorder 1, %s15
      %p224 = scmp.lt.s32.totalorder %s15, 3
      %p225 = pnand %p223, %p224
      %p226 = pneg %p225
      // Predicated region
      $region41: #{tfan_1d_forward.1} parent=5 // pred_check
        _
      $region42: #{tfan_1d_forward.1} parent=5 // pred_check_branch
        %228 = sbr.rel (%p225) target = $region44
      $region43: #{tfan_1d_forward.1} parent=5 // pred_region
        %s229 = ssub.s32 %s15, 1
        %p230 = scmp.lt.s32.totalorder %s20, 1
        %s231 = scalar_select %p230, %s20, 1
        %s232 = smul.addr %s231, 2
        %s233 = smul.addr %s232, 4
        %s234 = scalar_lea.vmem %s0, %s233
        %p235 = pneg %p41
        %p236 = pneg %p38
        %p237 = scmp.lt.s32.totalorder %s20, 1
        %s238 = scalar_select %p237, %s20, 1
        %s239 = smul.addr %s238, 8
        %s240 = scalar_lea.vmem %s1, %s239
        %p241 = pneg %p67
        %p242 = pneg %p64
        %p243 = pneg %p88
        %p244 = pneg %p85
        %p245 = pneg %p109
        %p246 = pneg %p106
        %p247 = pneg %p130
        %p248 = pneg %p127
        %p249 = pneg %p151
        %p250 = pneg %p148
        %p251 = pneg %p177
        %p252 = pneg %p174
        %s253 = sand.u32 %s164, 1
        %s254 = scalar_lea.sflag [#allocation4], %s253
        %s255 = sand.u32 %s164, 1
        %s256 = smul.addr %s255, 8
        %s257 = scalar_lea.vmem [#allocation3], %s256
        %p258 = scmp.lt.s32.totalorder %s20, 1
        %s259 = scalar_select %p258, %s20, 1
        %s260 = smul.addr %s259, 2
        %s261 = smul.addr %s260, 4
        %s262 = scalar_lea.vmem %s0, %s261
        %p263 = scmp.lt.s32.totalorder %s20, 1
        %s264 = scalar_select %p263, %s20, 1
        %s265 = smul.addr %s264, 8
        %s266 = scalar_lea.vmem %s1, %s265
        %268 = vst [vmem:[#allocation2] sm:$0xf] 0
        %269 = vst [vmem:[#allocation2 + $0x4] sm:$0xf] 0
        %270 = vst [vmem:[#allocation2 + $0x8] sm:$0x3] 0
        %v271 = vld [vmem:[%s262] sm:$0xf]
        %v272 = vld [vmem:[%s262 + $0x4] sm:$0xf]
        %vm275 = vcmask 1040384
        %vm276 = vcmask 1044484
        %vm277 = vmor %vm275, %vm276
        %v278 = vrot.slane %v271, 7
        %v279 = vrot.slane %v278, 4
        %v280 = vrot.slane %v272, 7
        %v281 = vsel %vm277, %v279, %v280
        %v282 = vrot.slane %v280, 4
        %286 = vst [vmem:[#allocation2] sm:$0xe] %v278
        %287 = vst [vmem:[#allocation2 + $0x4] sm:$0xf] %v281
        %288 = vst [vmem:[#allocation2 + $0x8] sm:$0x1] %v282
        %v289 = vld [vmem:[%s3] sm:$0x1]
        %v290 = vld [vmem:[#allocation2] sm:$0xf]
        %v291 = vld [vmem:[#allocation2 + $0x4] sm:$0xf]
        %v292 = vld [vmem:[%s2] sm:$0xf]
        %v293 = vld [vmem:[%s2 + $0x4] sm:$0xf]
        %v294 = vld [vmem:[%s2 + $0x8] sm:$0xf]
        %v295 = vld [vmem:[%s2 + $0xc] sm:$0xf]
        %v296 = vld [vmem:[%s2 + $0x10] sm:$0xf]
        %v297 = vld [vmem:[%s2 + $0x14] sm:$0xf]
        %v298 = vld [vmem:[%s2 + $0x18] sm:$0xf]
        %v299 = vld [vmem:[%s2 + $0x1c] sm:$0xf]
        %v300 = vld [vmem:[%s2 + $0x20] sm:$0xf]
        %v301 = vld [vmem:[%s2 + $0x24] sm:$0xf]
        %v302 = vld [vmem:[%s2 + $0x28] sm:$0xf]
        %v303 = vld [vmem:[%s2 + $0x2c] sm:$0xf]
        %v304 = vld [vmem:[%s2 + $0x30] sm:$0xf]
        %v305 = vld [vmem:[%s2 + $0x34] sm:$0xf]
        %v306 = vld [vmem:[%s2 + $0x38] sm:$0xf]
        %v307 = vld [vmem:[%s2 + $0x3c] sm:$0xf]
        %v308 = vld [vmem:[#allocation2 + $0x8] sm:$0x1]
        %s309 = scalar_lea.vmem %s2, 64
        %v310 = vld [vmem:[%s309] sm:$0xf]
        %v311 = vld [vmem:[%s309 + $0x4] sm:$0xf]
        %v312 = vld [vmem:[%s309 + $0x8] sm:$0xf]
        %v313 = vld [vmem:[%s309 + $0xc] sm:$0xf]
        %v314 = vld [vmem:[%s309 + $0x10] sm:$0xf]
        %v315 = vld [vmem:[%s309 + $0x14] sm:$0xf]
        %v316 = vld [vmem:[%s309 + $0x18] sm:$0xf]
        %v317 = vld [vmem:[%s309 + $0x1c] sm:$0xf]
        %v318 = vld [vmem:[%s309 + $0x20] sm:$0xf]
        %v319 = vld [vmem:[%s309 + $0x24] sm:$0xf]
        %v320 = vld [vmem:[%s309 + $0x28] sm:$0xf]
        %v321 = vld [vmem:[%s309 + $0x2c] sm:$0xf]
        %v322 = vld [vmem:[%s309 + $0x30] sm:$0xf]
        %v323 = vld [vmem:[%s309 + $0x34] sm:$0xf]
        %v324 = vld [vmem:[%s309 + $0x38] sm:$0xf]
        %v325 = vld [vmem:[%s309 + $0x3c] sm:$0xf]
        %v329 = vunpack.c.l.b16 %v290
        %v330 = vunpack.c.l.b16 %v291
        %v331 = vunpack.c.l.b16 %v308
        %v332 = vpack.c.b16 %v330, %v329
        %v333 = vpack.c.b16 %v331, %v331
        %vm334 = vsmask.f32 7424
        %v336 = vshrl.u32 %v332, 16
        %v338 = vshll.u32 %v332, 16
        %v340 = vrot.slane %v338, 1
        %v341 = vor.u32 %v336, %v340
        %v343 = vshll.u32 %v333, 16
        %v345 = vrot.slane %v343, 1
        %v346 = vsel %vm334, %v341, %v345
        %v364 = vunpack.c.l.b16 %v310
        %v365 = vunpack.c.l.b16 %v311
        %v366 = vunpack.c.l.b16 %v312
        %v367 = vunpack.c.l.b16 %v313
        %v368 = vunpack.c.l.b16 %v314
        %v369 = vunpack.c.l.b16 %v315
        %v370 = vunpack.c.l.b16 %v316
        %v371 = vunpack.c.l.b16 %v317
        %v372 = vunpack.c.l.b16 %v318
        %v373 = vunpack.c.l.b16 %v319
        %v374 = vunpack.c.l.b16 %v320
        %v375 = vunpack.c.l.b16 %v321
        %v376 = vunpack.c.l.b16 %v322
        %v377 = vunpack.c.l.b16 %v323
        %v378 = vunpack.c.l.b16 %v324
        %v379 = vunpack.c.l.b16 %v325
        %v380 = vpack.c.b16 %v365, %v364
        %v381 = vpack.c.b16 %v367, %v366
        %v382 = vpack.c.b16 %v369, %v368
        %v383 = vpack.c.b16 %v371, %v370
        %v384 = vpack.c.b16 %v373, %v372
        %v385 = vpack.c.b16 %v375, %v374
        %v386 = vpack.c.b16 %v377, %v376
        %v387 = vpack.c.b16 %v379, %v378
        %396 = vmatpush.bf16.msra.mxu0 %v387
        %397 = vmatpush.bf16.msra.mxu0 %v386
        %398 = vmatpush.bf16.msra.mxu0 %v385
        %399 = vmatpush.bf16.msra.mxu0 %v384
        %400 = vmatpush.bf16.msra.mxu0 %v383
        %401 = vmatpush.bf16.msra.mxu0 %v382
        %402 = vmatpush.bf16.msra.mxu0 %v381
        %403 = vmatpush.bf16.msra.mxu0 %v380
        %404 = vmatmul.bf16.gmra.mxu0 %v346
        %v405 = vpop.f32.mrf.mxu0
        %v406 = vadd.f32 0.0, %v405
        %v407 = vpop.f32.mrf.mxu0
        %v408 = vadd.f32 0.0, %v407
        %409 = vdwg.mxu0
        %v427 = vunpack.c.l.b16 %v292
        %v428 = vunpack.c.l.b16 %v293
        %v429 = vunpack.c.l.b16 %v294
        %v430 = vunpack.c.l.b16 %v295
        %v431 = vunpack.c.l.b16 %v296
        %v432 = vunpack.c.l.b16 %v297
        %v433 = vunpack.c.l.b16 %v298
        %v434 = vunpack.c.l.b16 %v299
        %v435 = vunpack.c.l.b16 %v300
        %v436 = vunpack.c.l.b16 %v301
        %v437 = vunpack.c.l.b16 %v302
        %v438 = vunpack.c.l.b16 %v303
        %v439 = vunpack.c.l.b16 %v304
        %v440 = vunpack.c.l.b16 %v305
        %v441 = vunpack.c.l.b16 %v306
        %v442 = vunpack.c.l.b16 %v307
        %v443 = vpack.c.b16 %v428, %v427
        %v444 = vpack.c.b16 %v430, %v429
        %v445 = vpack.c.b16 %v432, %v431
        %v446 = vpack.c.b16 %v434, %v433
        %v447 = vpack.c.b16 %v436, %v435
        %v448 = vpack.c.b16 %v438, %v437
        %v449 = vpack.c.b16 %v440, %v439
        %v450 = vpack.c.b16 %v442, %v441
        %459 = vmatpush.bf16.msra.mxu0 %v450
        %460 = vmatpush.bf16.msra.mxu0 %v449
        %461 = vmatpush.bf16.msra.mxu0 %v448
        %462 = vmatpush.bf16.msra.mxu0 %v447
        %463 = vmatpush.bf16.msra.mxu0 %v446
        %464 = vmatpush.bf16.msra.mxu0 %v445
        %465 = vmatpush.bf16.msra.mxu0 %v444
        %466 = vmatpush.bf16.msra.mxu0 %v443
        %467 = vmatmul.bf16.gmra.mxu0 %v332
        %v468 = vpop.f32.mrf.mxu0
        %v469 = vadd.f32 %v406, %v468
        %v470 = vpop.f32.mrf.mxu0
        %v471 = vadd.f32 %v408, %v470
        %472 = vdwg.mxu0
        %v473 = vld [vmem:[#allocation2] sm:$0xe]
        %s474 = scalar_lea.vmem %s2, 128
        %v475 = vld [vmem:[%s474] sm:$0xf]
        %v476 = vld [vmem:[%s474 + $0x4] sm:$0xf]
        %v477 = vld [vmem:[%s474 + $0x8] sm:$0xf]
        %v478 = vld [vmem:[%s474 + $0xc] sm:$0xf]
        %v479 = vld [vmem:[%s474 + $0x10] sm:$0xf]
        %v480 = vld [vmem:[%s474 + $0x14] sm:$0xf]
        %v481 = vld [vmem:[%s474 + $0x18] sm:$0xf]
        %v482 = vld [vmem:[%s474 + $0x1c] sm:$0xf]
        %v483 = vld [vmem:[%s474 + $0x20] sm:$0xf]
        %v484 = vld [vmem:[%s474 + $0x24] sm:$0xf]
        %v485 = vld [vmem:[%s474 + $0x28] sm:$0xf]
        %v486 = vld [vmem:[%s474 + $0x2c] sm:$0xf]
        %v487 = vld [vmem:[%s474 + $0x30] sm:$0xf]
        %v488 = vld [vmem:[%s474 + $0x34] sm:$0xf]
        %v489 = vld [vmem:[%s474 + $0x38] sm:$0xf]
        %v490 = vld [vmem:[%s474 + $0x3c] sm:$0xf]
        %v492 = vunpack.c.l.b16 %v473
        %v493 = vpack.c.b16 %v330, %v492
        %vm494 = vcmask 1046528
        %v495 = vrot.slane %v493, 1
        %v496 = vrot.slane %v333, 1
        %v497 = vsel %vm494, %v495, %v496
        %v515 = vunpack.c.l.b16 %v475
        %v516 = vunpack.c.l.b16 %v476
        %v517 = vunpack.c.l.b16 %v477
        %v518 = vunpack.c.l.b16 %v478
        %v519 = vunpack.c.l.b16 %v479
        %v520 = vunpack.c.l.b16 %v480
        %v521 = vunpack.c.l.b16 %v481
        %v522 = vunpack.c.l.b16 %v482
        %v523 = vunpack.c.l.b16 %v483
        %v524 = vunpack.c.l.b16 %v484
        %v525 = vunpack.c.l.b16 %v485
        %v526 = vunpack.c.l.b16 %v486
        %v527 = vunpack.c.l.b16 %v487
        %v528 = vunpack.c.l.b16 %v488
        %v529 = vunpack.c.l.b16 %v489
        %v530 = vunpack.c.l.b16 %v490
        %v531 = vpack.c.b16 %v516, %v515
        %v532 = vpack.c.b16 %v518, %v517
        %v533 = vpack.c.b16 %v520, %v519
        %v534 = vpack.c.b16 %v522, %v521
        %v535 = vpack.c.b16 %v524, %v523
        %v536 = vpack.c.b16 %v526, %v525
        %v537 = vpack.c.b16 %v528, %v527
        %v538 = vpack.c.b16 %v530, %v529
        %547 = vmatpush.bf16.msra.mxu0 %v538
        %548 = vmatpush.bf16.msra.mxu0 %v537
        %549 = vmatpush.bf16.msra.mxu0 %v536
        %550 = vmatpush.bf16.msra.mxu0 %v535
        %551 = vmatpush.bf16.msra.mxu0 %v534
        %552 = vmatpush.bf16.msra.mxu0 %v533
        %553 = vmatpush.bf16.msra.mxu0 %v532
        %554 = vmatpush.bf16.msra.mxu0 %v531
        %555 = vmatmul.bf16.gmra.mxu0 %v497
        %v556 = vpop.f32.mrf.mxu0
        %v557 = vadd.f32 0.0, %v556
        %v558 = vpop.f32.mrf.mxu0
        %v559 = vadd.f32 0.0, %v558
        %560 = vdwg.mxu0
        %v561 = vadd.f32 %v469, %v557
        %v562 = vadd.f32 %v471, %v559
        %v563 = vld [vmem:[#allocation2 + $0x8] sm:$0x3]
        %s564 = scalar_lea.vmem %s2, 192
        %v565 = vld [vmem:[%s564] sm:$0xf]
        %v566 = vld [vmem:[%s564 + $0x4] sm:$0xf]
        %v567 = vld [vmem:[%s564 + $0x8] sm:$0xf]
        %v568 = vld [vmem:[%s564 + $0xc] sm:$0xf]
        %v569 = vld [vmem:[%s564 + $0x10] sm:$0xf]
        %v570 = vld [vmem:[%s564 + $0x14] sm:$0xf]
        %v571 = vld [vmem:[%s564 + $0x18] sm:$0xf]
        %v572 = vld [vmem:[%s564 + $0x1c] sm:$0xf]
        %v573 = vld [vmem:[%s564 + $0x20] sm:$0xf]
        %v574 = vld [vmem:[%s564 + $0x24] sm:$0xf]
        %v575 = vld [vmem:[%s564 + $0x28] sm:$0xf]
        %v576 = vld [vmem:[%s564 + $0x2c] sm:$0xf]
        %v577 = vld [vmem:[%s564 + $0x30] sm:$0xf]
        %v578 = vld [vmem:[%s564 + $0x34] sm:$0xf]
        %v579 = vld [vmem:[%s564 + $0x38] sm:$0xf]
        %v580 = vld [vmem:[%s564 + $0x3c] sm:$0xf]
        %v582 = vunpack.c.l.b16 %v563
        %v583 = vpack.c.b16 %v582, %v582
        %vm584 = vsmask.f32 6400
        %v586 = vshrl.u32 %v493, 16
        %v588 = vrot.slane %v586, 1
        %v589 = vshll.u32 %v493, 16
        %v591 = vrot.slane %v589, 2
        %v592 = vor.u32 %v588, %v591
        %v594 = vshrl.u32 %v583, 16
        %v596 = vrot.slane %v594, 1
        %v597 = vshll.u32 %v583, 16
        %v599 = vrot.slane %v597, 2
        %v600 = vor.u32 %v596, %v599
        %v601 = vsel %vm584, %v592, %v600
        %v619 = vunpack.c.l.b16 %v565
        %v620 = vunpack.c.l.b16 %v566
        %v621 = vunpack.c.l.b16 %v567
        %v622 = vunpack.c.l.b16 %v568
        %v623 = vunpack.c.l.b16 %v569
        %v624 = vunpack.c.l.b16 %v570
        %v625 = vunpack.c.l.b16 %v571
        %v626 = vunpack.c.l.b16 %v572
        %v627 = vunpack.c.l.b16 %v573
        %v628 = vunpack.c.l.b16 %v574
        %v629 = vunpack.c.l.b16 %v575
        %v630 = vunpack.c.l.b16 %v576
        %v631 = vunpack.c.l.b16 %v577
        %v632 = vunpack.c.l.b16 %v578
        %v633 = vunpack.c.l.b16 %v579
        %v634 = vunpack.c.l.b16 %v580
        %v635 = vpack.c.b16 %v620, %v619
        %v636 = vpack.c.b16 %v622, %v621
        %v637 = vpack.c.b16 %v624, %v623
        %v638 = vpack.c.b16 %v626, %v625
        %v639 = vpack.c.b16 %v628, %v627
        %v640 = vpack.c.b16 %v630, %v629
        %v641 = vpack.c.b16 %v632, %v631
        %v642 = vpack.c.b16 %v634, %v633
        %651 = vmatpush.bf16.msra.mxu0 %v642
        %652 = vmatpush.bf16.msra.mxu0 %v641
        %653 = vmatpush.bf16.msra.mxu0 %v640
        %654 = vmatpush.bf16.msra.mxu0 %v639
        %655 = vmatpush.bf16.msra.mxu0 %v638
        %656 = vmatpush.bf16.msra.mxu0 %v637
        %657 = vmatpush.bf16.msra.mxu0 %v636
        %658 = vmatpush.bf16.msra.mxu0 %v635
        %659 = vmatmul.bf16.gmra.mxu0 %v601
        %v660 = vpop.f32.mrf.mxu0
        %v661 = vadd.f32 0.0, %v660
        %v662 = vpop.f32.mrf.mxu0
        %v663 = vadd.f32 0.0, %v662
        %664 = vdwg.mxu0
        %v665 = vadd.f32 %v561, %v661
        %v666 = vadd.f32 %v562, %v663
        %v667 = vld [vmem:[#allocation2] sm:$0xc]
        %s668 = scalar_lea.vmem %s2, 256
        %v669 = vld [vmem:[%s668] sm:$0xf]
        %v670 = vld [vmem:[%s668 + $0x4] sm:$0xf]
        %v671 = vld [vmem:[%s668 + $0x8] sm:$0xf]
        %v672 = vld [vmem:[%s668 + $0xc] sm:$0xf]
        %v673 = vld [vmem:[%s668 + $0x10] sm:$0xf]
        %v674 = vld [vmem:[%s668 + $0x14] sm:$0xf]
        %v675 = vld [vmem:[%s668 + $0x18] sm:$0xf]
        %v676 = vld [vmem:[%s668 + $0x1c] sm:$0xf]
        %v677 = vld [vmem:[%s668 + $0x20] sm:$0xf]
        %v678 = vld [vmem:[%s668 + $0x24] sm:$0xf]
        %v679 = vld [vmem:[%s668 + $0x28] sm:$0xf]
        %v680 = vld [vmem:[%s668 + $0x2c] sm:$0xf]
        %v681 = vld [vmem:[%s668 + $0x30] sm:$0xf]
        %v682 = vld [vmem:[%s668 + $0x34] sm:$0xf]
        %v683 = vld [vmem:[%s668 + $0x38] sm:$0xf]
        %v684 = vld [vmem:[%s668 + $0x3c] sm:$0xf]
        %v686 = vunpack.c.l.b16 %v667
        %v687 = vpack.c.b16 %v330, %v686
        %vm688 = vcmask 1045504
        %v689 = vrot.slane %v687, 2
        %v690 = vrot.slane %v583, 2
        %v691 = vsel %vm688, %v689, %v690
        %v709 = vunpack.c.l.b16 %v669
        %v710 = vunpack.c.l.b16 %v670
        %v711 = vunpack.c.l.b16 %v671
        %v712 = vunpack.c.l.b16 %v672
        %v713 = vunpack.c.l.b16 %v673
        %v714 = vunpack.c.l.b16 %v674
        %v715 = vunpack.c.l.b16 %v675
        %v716 = vunpack.c.l.b16 %v676
        %v717 = vunpack.c.l.b16 %v677
        %v718 = vunpack.c.l.b16 %v678
        %v719 = vunpack.c.l.b16 %v679
        %v720 = vunpack.c.l.b16 %v680
        %v721 = vunpack.c.l.b16 %v681
        %v722 = vunpack.c.l.b16 %v682
        %v723 = vunpack.c.l.b16 %v683
        %v724 = vunpack.c.l.b16 %v684
        %v725 = vpack.c.b16 %v710, %v709
        %v726 = vpack.c.b16 %v712, %v711
        %v727 = vpack.c.b16 %v714, %v713
        %v728 = vpack.c.b16 %v716, %v715
        %v729 = vpack.c.b16 %v718, %v717
        %v730 = vpack.c.b16 %v720, %v719
        %v731 = vpack.c.b16 %v722, %v721
        %v732 = vpack.c.b16 %v724, %v723
        %741 = vmatpush.bf16.msra.mxu0 %v732
        %742 = vmatpush.bf16.msra.mxu0 %v731
        %743 = vmatpush.bf16.msra.mxu0 %v730
        %744 = vmatpush.bf16.msra.mxu0 %v729
        %745 = vmatpush.bf16.msra.mxu0 %v728
        %746 = vmatpush.bf16.msra.mxu0 %v727
        %747 = vmatpush.bf16.msra.mxu0 %v726
        %748 = vmatpush.bf16.msra.mxu0 %v725
        %749 = vmatmul.bf16.gmra.mxu0 %v691
        %v750 = vpop.f32.mrf.mxu0
        %v751 = vadd.f32 0.0, %v750
        %v752 = vpop.f32.mrf.mxu0
        %v753 = vadd.f32 0.0, %v752
        %754 = vdwg.mxu0
        %v755 = vadd.f32 %v665, %v751
        %v756 = vadd.f32 %v666, %v753
        %v758 = vperm.slane %v289, 0
        %v760 = vadd.f32 %v755, %v758
        %v761 = vadd.f32 %v756, %v758
        %v762 = vmax.f32 %v760, 0.0
        %v763 = vmax.f32 %v761, 0.0
        %v764 = vpack.c.bf16 %v762, %v762
        %v765 = vpack.c.bf16 %v763, %v763
        %v768 = vrot.slane %v764, 7
        %v769 = vrot.slane %v768, 4
        %v770 = vrot.slane %v765, 7
        %v771 = vsel %vm277, %v769, %v770
        %v772 = vrot.slane %v770, 4
        %776 = vst [vmem:[#allocation2] sm:$0xe] %v768
        %777 = vst [vmem:[#allocation2 + $0x4] sm:$0xf] %v771
        %778 = vst [vmem:[#allocation2 + $0x8] sm:$0x1] %v772
        %v779 = vld [vmem:[#allocation2] sm:$0xf]
        %v780 = vld [vmem:[#allocation2 + $0x4] sm:$0xf]
        %v781 = vld [vmem:[%s2] sm:$0xf]
        %v782 = vld [vmem:[%s2 + $0x4] sm:$0xf]
        %v783 = vld [vmem:[%s2 + $0x8] sm:$0xf]
        %v784 = vld [vmem:[%s2 + $0xc] sm:$0xf]
        %v785 = vld [vmem:[%s2 + $0x10] sm:$0xf]
        %v786 = vld [vmem:[%s2 + $0x14] sm:$0xf]
        %v787 = vld [vmem:[%s2 + $0x18] sm:$0xf]
        %v788 = vld [vmem:[%s2 + $0x1c] sm:$0xf]
        %v789 = vld [vmem:[%s2 + $0x20] sm:$0xf]
        %v790 = vld [vmem:[%s2 + $0x24] sm:$0xf]
        %v791 = vld [vmem:[%s2 + $0x28] sm:$0xf]
        %v792 = vld [vmem:[%s2 + $0x2c] sm:$0xf]
        %v793 = vld [vmem:[%s2 + $0x30] sm:$0xf]
        %v794 = vld [vmem:[%s2 + $0x34] sm:$0xf]
        %v795 = vld [vmem:[%s2 + $0x38] sm:$0xf]
        %v796 = vld [vmem:[%s2 + $0x3c] sm:$0xf]
        %v797 = vld [vmem:[#allocation2 + $0x8] sm:$0x1]
        %v798 = vld [vmem:[%s309] sm:$0xf]
        %v799 = vld [vmem:[%s309 + $0x4] sm:$0xf]
        %v800 = vld [vmem:[%s309 + $0x8] sm:$0xf]
        %v801 = vld [vmem:[%s309 + $0xc] sm:$0xf]
        %v802 = vld [vmem:[%s309 + $0x10] sm:$0xf]
        %v803 = vld [vmem:[%s309 + $0x14] sm:$0xf]
        %v804 = vld [vmem:[%s309 + $0x18] sm:$0xf]
        %v805 = vld [vmem:[%s309 + $0x1c] sm:$0xf]
        %v806 = vld [vmem:[%s309 + $0x20] sm:$0xf]
        %v807 = vld [vmem:[%s309 + $0x24] sm:$0xf]
        %v808 = vld [vmem:[%s309 + $0x28] sm:$0xf]
        %v809 = vld [vmem:[%s309 + $0x2c] sm:$0xf]
        %v810 = vld [vmem:[%s309 + $0x30] sm:$0xf]
        %v811 = vld [vmem:[%s309 + $0x34] sm:$0xf]
        %v812 = vld [vmem:[%s309 + $0x38] sm:$0xf]
        %v813 = vld [vmem:[%s309 + $0x3c] sm:$0xf]
        %v817 = vunpack.c.l.b16 %v779
        %v818 = vunpack.c.l.b16 %v780
        %v819 = vunpack.c.l.b16 %v797
        %v820 = vpack.c.b16 %v818, %v817
        %v821 = vpack.c.b16 %v819, %v819
        %v823 = vshrl.u32 %v820, 16
        %v825 = vshll.u32 %v820, 16
        %v827 = vrot.slane %v825, 1
        %v828 = vor.u32 %v823, %v827
        %v830 = vshll.u32 %v821, 16
        %v832 = vrot.slane %v830, 1
        %v833 = vsel %vm334, %v828, %v832
        %v851 = vunpack.c.l.b16 %v798
        %v852 = vunpack.c.l.b16 %v799
        %v853 = vunpack.c.l.b16 %v800
        %v854 = vunpack.c.l.b16 %v801
        %v855 = vunpack.c.l.b16 %v802
        %v856 = vunpack.c.l.b16 %v803
        %v857 = vunpack.c.l.b16 %v804
        %v858 = vunpack.c.l.b16 %v805
        %v859 = vunpack.c.l.b16 %v806
        %v860 = vunpack.c.l.b16 %v807
        %v861 = vunpack.c.l.b16 %v808
        %v862 = vunpack.c.l.b16 %v809
        %v863 = vunpack.c.l.b16 %v810
        %v864 = vunpack.c.l.b16 %v811
        %v865 = vunpack.c.l.b16 %v812
        %v866 = vunpack.c.l.b16 %v813
        %v867 = vpack.c.b16 %v852, %v851
        %v868 = vpack.c.b16 %v854, %v853
        %v869 = vpack.c.b16 %v856, %v855
        %v870 = vpack.c.b16 %v858, %v857
        %v871 = vpack.c.b16 %v860, %v859
        %v872 = vpack.c.b16 %v862, %v861
        %v873 = vpack.c.b16 %v864, %v863
        %v874 = vpack.c.b16 %v866, %v865
        %883 = vmatpush.bf16.msra.mxu0 %v874
        %884 = vmatpush.bf16.msra.mxu0 %v873
        %885 = vmatpush.bf16.msra.mxu0 %v872
        %886 = vmatpush.bf16.msra.mxu0 %v871
        %887 = vmatpush.bf16.msra.mxu0 %v870
        %888 = vmatpush.bf16.msra.mxu0 %v869
        %889 = vmatpush.bf16.msra.mxu0 %v868
        %890 = vmatpush.bf16.msra.mxu0 %v867
        %891 = vmatmul.bf16.gmra.mxu0 %v833
        %v892 = vpop.f32.mrf.mxu0
        %v893 = vadd.f32 0.0, %v892
        %v894 = vpop.f32.mrf.mxu0
        %v895 = vadd.f32 0.0, %v894
        %896 = vdwg.mxu0
        %v914 = vunpack.c.l.b16 %v781
        %v915 = vunpack.c.l.b16 %v782
        %v916 = vunpack.c.l.b16 %v783
        %v917 = vunpack.c.l.b16 %v784
        %v918 = vunpack.c.l.b16 %v785
        %v919 = vunpack.c.l.b16 %v786
        %v920 = vunpack.c.l.b16 %v787
        %v921 = vunpack.c.l.b16 %v788
        %v922 = vunpack.c.l.b16 %v789
        %v923 = vunpack.c.l.b16 %v790
        %v924 = vunpack.c.l.b16 %v791
        %v925 = vunpack.c.l.b16 %v792
        %v926 = vunpack.c.l.b16 %v793
        %v927 = vunpack.c.l.b16 %v794
        %v928 = vunpack.c.l.b16 %v795
        %v929 = vunpack.c.l.b16 %v796
        %v930 = vpack.c.b16 %v915, %v914
        %v931 = vpack.c.b16 %v917, %v916
        %v932 = vpack.c.b16 %v919, %v918
        %v933 = vpack.c.b16 %v921, %v920
        %v934 = vpack.c.b16 %v923, %v922
        %v935 = vpack.c.b16 %v925, %v924
        %v936 = vpack.c.b16 %v927, %v926
        %v937 = vpack.c.b16 %v929, %v928
        %946 = vmatpush.bf16.msra.mxu0 %v937
        %947 = vmatpush.bf16.msra.mxu0 %v936
        %948 = vmatpush.bf16.msra.mxu0 %v935
        %949 = vmatpush.bf16.msra.mxu0 %v934
        %950 = vmatpush.bf16.msra.mxu0 %v933
        %951 = vmatpush.bf16.msra.mxu0 %v932
        %952 = vmatpush.bf16.msra.mxu0 %v931
        %953 = vmatpush.bf16.msra.mxu0 %v930
        %954 = vmatmul.bf16.gmra.mxu0 %v820
        %v955 = vpop.f32.mrf.mxu0
        %v956 = vadd.f32 %v893, %v955
        %v957 = vpop.f32.mrf.mxu0
        %v958 = vadd.f32 %v895, %v957
        %959 = vdwg.mxu0
        %v960 = vld [vmem:[#allocation2] sm:$0xe]
        %v961 = vld [vmem:[%s474] sm:$0xf]
        %v962 = vld [vmem:[%s474 + $0x4] sm:$0xf]
        %v963 = vld [vmem:[%s474 + $0x8] sm:$0xf]
        %v964 = vld [vmem:[%s474 + $0xc] sm:$0xf]
        %v965 = vld [vmem:[%s474 + $0x10] sm:$0xf]
        %v966 = vld [vmem:[%s474 + $0x14] sm:$0xf]
        %v967 = vld [vmem:[%s474 + $0x18] sm:$0xf]
        %v968 = vld [vmem:[%s474 + $0x1c] sm:$0xf]
        %v969 = vld [vmem:[%s474 + $0x20] sm:$0xf]
        %v970 = vld [vmem:[%s474 + $0x24] sm:$0xf]
        %v971 = vld [vmem:[%s474 + $0x28] sm:$0xf]
        %v972 = vld [vmem:[%s474 + $0x2c] sm:$0xf]
        %v973 = vld [vmem:[%s474 + $0x30] sm:$0xf]
        %v974 = vld [vmem:[%s474 + $0x34] sm:$0xf]
        %v975 = vld [vmem:[%s474 + $0x38] sm:$0xf]
        %v976 = vld [vmem:[%s474 + $0x3c] sm:$0xf]
        %v978 = vunpack.c.l.b16 %v960
        %v979 = vpack.c.b16 %v818, %v978
        %v980 = vrot.slane %v979, 1
        %v981 = vrot.slane %v821, 1
        %v982 = vsel %vm494, %v980, %v981
        %v1000 = vunpack.c.l.b16 %v961
        %v1001 = vunpack.c.l.b16 %v962
        %v1002 = vunpack.c.l.b16 %v963
        %v1003 = vunpack.c.l.b16 %v964
        %v1004 = vunpack.c.l.b16 %v965
        %v1005 = vunpack.c.l.b16 %v966
        %v1006 = vunpack.c.l.b16 %v967
        %v1007 = vunpack.c.l.b16 %v968
        %v1008 = vunpack.c.l.b16 %v969
        %v1009 = vunpack.c.l.b16 %v970
        %v1010 = vunpack.c.l.b16 %v971
        %v1011 = vunpack.c.l.b16 %v972
        %v1012 = vunpack.c.l.b16 %v973
        %v1013 = vunpack.c.l.b16 %v974
        %v1014 = vunpack.c.l.b16 %v975
        %v1015 = vunpack.c.l.b16 %v976
        %v1016 = vpack.c.b16 %v1001, %v1000
        %v1017 = vpack.c.b16 %v1003, %v1002
        %v1018 = vpack.c.b16 %v1005, %v1004
        %v1019 = vpack.c.b16 %v1007, %v1006
        %v1020 = vpack.c.b16 %v1009, %v1008
        %v1021 = vpack.c.b16 %v1011, %v1010
        %v1022 = vpack.c.b16 %v1013, %v1012
        %v1023 = vpack.c.b16 %v1015, %v1014
        %1032 = vmatpush.bf16.msra.mxu0 %v1023
        %1033 = vmatpush.bf16.msra.mxu0 %v1022
        %1034 = vmatpush.bf16.msra.mxu0 %v1021
        %1035 = vmatpush.bf16.msra.mxu0 %v1020
        %1036 = vmatpush.bf16.msra.mxu0 %v1019
        %1037 = vmatpush.bf16.msra.mxu0 %v1018
        %1038 = vmatpush.bf16.msra.mxu0 %v1017
        %1039 = vmatpush.bf16.msra.mxu0 %v1016
        %1040 = vmatmul.bf16.gmra.mxu0 %v982
        %v1041 = vpop.f32.mrf.mxu0
        %v1042 = vadd.f32 0.0, %v1041
        %v1043 = vpop.f32.mrf.mxu0
        %v1044 = vadd.f32 0.0, %v1043
        %1045 = vdwg.mxu0
        %v1046 = vadd.f32 %v956, %v1042
        %v1047 = vadd.f32 %v958, %v1044
        %v1048 = vld [vmem:[#allocation2 + $0x8] sm:$0x3]
        %v1049 = vld [vmem:[%s564] sm:$0xf]
        %v1050 = vld [vmem:[%s564 + $0x4] sm:$0xf]
        %v1051 = vld [vmem:[%s564 + $0x8] sm:$0xf]
        %v1052 = vld [vmem:[%s564 + $0xc] sm:$0xf]
        %v1053 = vld [vmem:[%s564 + $0x10] sm:$0xf]
        %v1054 = vld [vmem:[%s564 + $0x14] sm:$0xf]
        %v1055 = vld [vmem:[%s564 + $0x18] sm:$0xf]
        %v1056 = vld [vmem:[%s564 + $0x1c] sm:$0xf]
        %v1057 = vld [vmem:[%s564 + $0x20] sm:$0xf]
        %v1058 = vld [vmem:[%s564 + $0x24] sm:$0xf]
        %v1059 = vld [vmem:[%s564 + $0x28] sm:$0xf]
        %v1060 = vld [vmem:[%s564 + $0x2c] sm:$0xf]
        %v1061 = vld [vmem:[%s564 + $0x30] sm:$0xf]
        %v1062 = vld [vmem:[%s564 + $0x34] sm:$0xf]
        %v1063 = vld [vmem:[%s564 + $0x38] sm:$0xf]
        %v1064 = vld [vmem:[%s564 + $0x3c] sm:$0xf]
        %v1066 = vunpack.c.l.b16 %v1048
        %v1067 = vpack.c.b16 %v1066, %v1066
        %v1069 = vshrl.u32 %v979, 16
        %v1071 = vrot.slane %v1069, 1
        %v1072 = vshll.u32 %v979, 16
        %v1074 = vrot.slane %v1072, 2
        %v1075 = vor.u32 %v1071, %v1074
        %v1077 = vshrl.u32 %v1067, 16
        %v1079 = vrot.slane %v1077, 1
        %v1080 = vshll.u32 %v1067, 16
        %v1082 = vrot.slane %v1080, 2
        %v1083 = vor.u32 %v1079, %v1082
        %v1084 = vsel %vm584, %v1075, %v1083
        %v1102 = vunpack.c.l.b16 %v1049
        %v1103 = vunpack.c.l.b16 %v1050
        %v1104 = vunpack.c.l.b16 %v1051
        %v1105 = vunpack.c.l.b16 %v1052
        %v1106 = vunpack.c.l.b16 %v1053
        %v1107 = vunpack.c.l.b16 %v1054
        %v1108 = vunpack.c.l.b16 %v1055
        %v1109 = vunpack.c.l.b16 %v1056
        %v1110 = vunpack.c.l.b16 %v1057
        %v1111 = vunpack.c.l.b16 %v1058
        %v1112 = vunpack.c.l.b16 %v1059
        %v1113 = vunpack.c.l.b16 %v1060
        %v1114 = vunpack.c.l.b16 %v1061
        %v1115 = vunpack.c.l.b16 %v1062
        %v1116 = vunpack.c.l.b16 %v1063
        %v1117 = vunpack.c.l.b16 %v1064
        %v1118 = vpack.c.b16 %v1103, %v1102
        %v1119 = vpack.c.b16 %v1105, %v1104
        %v1120 = vpack.c.b16 %v1107, %v1106
        %v1121 = vpack.c.b16 %v1109, %v1108
        %v1122 = vpack.c.b16 %v1111, %v1110
        %v1123 = vpack.c.b16 %v1113, %v1112
        %v1124 = vpack.c.b16 %v1115, %v1114
        %v1125 = vpack.c.b16 %v1117, %v1116
        %1134 = vmatpush.bf16.msra.mxu0 %v1125
        %1135 = vmatpush.bf16.msra.mxu0 %v1124
        %1136 = vmatpush.bf16.msra.mxu0 %v1123
        %1137 = vmatpush.bf16.msra.mxu0 %v1122
        %1138 = vmatpush.bf16.msra.mxu0 %v1121
        %1139 = vmatpush.bf16.msra.mxu0 %v1120
        %1140 = vmatpush.bf16.msra.mxu0 %v1119
        %1141 = vmatpush.bf16.msra.mxu0 %v1118
        %1142 = vmatmul.bf16.gmra.mxu0 %v1084
        %v1143 = vpop.f32.mrf.mxu0
        %v1144 = vadd.f32 0.0, %v1143
        %v1145 = vpop.f32.mrf.mxu0
        %v1146 = vadd.f32 0.0, %v1145
        %1147 = vdwg.mxu0
        %v1148 = vadd.f32 %v1046, %v1144
        %v1149 = vadd.f32 %v1047, %v1146
        %v1150 = vld [vmem:[#allocation2] sm:$0xc]
        %v1151 = vld [vmem:[%s668] sm:$0xf]
        %v1152 = vld [vmem:[%s668 + $0x4] sm:$0xf]
        %v1153 = vld [vmem:[%s668 + $0x8] sm:$0xf]
        %v1154 = vld [vmem:[%s668 + $0xc] sm:$0xf]
        %v1155 = vld [vmem:[%s668 + $0x10] sm:$0xf]
        %v1156 = vld [vmem:[%s668 + $0x14] sm:$0xf]
        %v1157 = vld [vmem:[%s668 + $0x18] sm:$0xf]
        %v1158 = vld [vmem:[%s668 + $0x1c] sm:$0xf]
        %v1159 = vld [vmem:[%s668 + $0x20] sm:$0xf]
        %v1160 = vld [vmem:[%s668 + $0x24] sm:$0xf]
        %v1161 = vld [vmem:[%s668 + $0x28] sm:$0xf]
        %v1162 = vld [vmem:[%s668 + $0x2c] sm:$0xf]
        %v1163 = vld [vmem:[%s668 + $0x30] sm:$0xf]
        %v1164 = vld [vmem:[%s668 + $0x34] sm:$0xf]
        %v1165 = vld [vmem:[%s668 + $0x38] sm:$0xf]
        %v1166 = vld [vmem:[%s668 + $0x3c] sm:$0xf]
        %v1168 = vunpack.c.l.b16 %v1150
        %v1169 = vpack.c.b16 %v818, %v1168
        %v1170 = vrot.slane %v1169, 2
        %v1171 = vrot.slane %v1067, 2
        %v1172 = vsel %vm688, %v1170, %v1171
        %v1190 = vunpack.c.l.b16 %v1151
        %v1191 = vunpack.c.l.b16 %v1152
        %v1192 = vunpack.c.l.b16 %v1153
        %v1193 = vunpack.c.l.b16 %v1154
        %v1194 = vunpack.c.l.b16 %v1155
        %v1195 = vunpack.c.l.b16 %v1156
        %v1196 = vunpack.c.l.b16 %v1157
        %v1197 = vunpack.c.l.b16 %v1158
        %v1198 = vunpack.c.l.b16 %v1159
        %v1199 = vunpack.c.l.b16 %v1160
        %v1200 = vunpack.c.l.b16 %v1161
        %v1201 = vunpack.c.l.b16 %v1162
        %v1202 = vunpack.c.l.b16 %v1163
        %v1203 = vunpack.c.l.b16 %v1164
        %v1204 = vunpack.c.l.b16 %v1165
        %v1205 = vunpack.c.l.b16 %v1166
        %v1206 = vpack.c.b16 %v1191, %v1190
        %v1207 = vpack.c.b16 %v1193, %v1192
        %v1208 = vpack.c.b16 %v1195, %v1194
        %v1209 = vpack.c.b16 %v1197, %v1196
        %v1210 = vpack.c.b16 %v1199, %v1198
        %v1211 = vpack.c.b16 %v1201, %v1200
        %v1212 = vpack.c.b16 %v1203, %v1202
        %v1213 = vpack.c.b16 %v1205, %v1204
        %1222 = vmatpush.bf16.msra.mxu0 %v1213
        %1223 = vmatpush.bf16.msra.mxu0 %v1212
        %1224 = vmatpush.bf16.msra.mxu0 %v1211
        %1225 = vmatpush.bf16.msra.mxu0 %v1210
        %1226 = vmatpush.bf16.msra.mxu0 %v1209
        %1227 = vmatpush.bf16.msra.mxu0 %v1208
        %1228 = vmatpush.bf16.msra.mxu0 %v1207
        %1229 = vmatpush.bf16.msra.mxu0 %v1206
        %1230 = vmatmul.bf16.gmra.mxu0 %v1172
        %v1231 = vpop.f32.mrf.mxu0
        %v1232 = vadd.f32 0.0, %v1231
        %v1233 = vpop.f32.mrf.mxu0
        %v1234 = vadd.f32 0.0, %v1233
        %1235 = vdwg.mxu0
        %v1236 = vadd.f32 %v1148, %v1232
        %v1237 = vadd.f32 %v1149, %v1234
        %v1238 = vadd.f32 %v1236, %v758
        %v1239 = vadd.f32 %v1237, %v758
        %v1240 = vmax.f32 %v1238, 0.0
        %v1241 = vmax.f32 %v1239, 0.0
        %v1242 = vpack.c.bf16 %v1240, %v1240
        %v1243 = vpack.c.bf16 %v1241, %v1241
        %v1246 = vrot.slane %v1242, 7
        %v1247 = vrot.slane %v1246, 4
        %v1248 = vrot.slane %v1243, 7
        %v1249 = vsel %vm277, %v1247, %v1248
        %v1250 = vrot.slane %v1248, 4
        %1254 = vst [vmem:[#allocation2] sm:$0xe] %v1246
        %1255 = vst [vmem:[#allocation2 + $0x4] sm:$0xf] %v1249
        %1256 = vst [vmem:[#allocation2 + $0x8] sm:$0x1] %v1250
        %v1257 = vld [vmem:[#allocation2] sm:$0xf]
        %v1258 = vld [vmem:[#allocation2 + $0x4] sm:$0xf]
        %v1259 = vld [vmem:[%s2] sm:$0xf]
        %v1260 = vld [vmem:[%s2 + $0x4] sm:$0xf]
        %v1261 = vld [vmem:[%s2 + $0x8] sm:$0xf]
        %v1262 = vld [vmem:[%s2 + $0xc] sm:$0xf]
        %v1263 = vld [vmem:[%s2 + $0x10] sm:$0xf]
        %v1264 = vld [vmem:[%s2 + $0x14] sm:$0xf]
        %v1265 = vld [vmem:[%s2 + $0x18] sm:$0xf]
        %v1266 = vld [vmem:[%s2 + $0x1c] sm:$0xf]
        %v1267 = vld [vmem:[%s2 + $0x20] sm:$0xf]
        %v1268 = vld [vmem:[%s2 + $0x24] sm:$0xf]
        %v1269 = vld [vmem:[%s2 + $0x28] sm:$0xf]
        %v1270 = vld [vmem:[%s2 + $0x2c] sm:$0xf]
        %v1271 = vld [vmem:[%s2 + $0x30] sm:$0xf]
        %v1272 = vld [vmem:[%s2 + $0x34] sm:$0xf]
        %v1273 = vld [vmem:[%s2 + $0x38] sm:$0xf]
        %v1274 = vld [vmem:[%s2 + $0x3c] sm:$0xf]
        %v1275 = vld [vmem:[#allocation2 + $0x8] sm:$0x1]
        %v1276 = vld [vmem:[%s309] sm:$0xf]
        %v1277 = vld [vmem:[%s309 + $0x4] sm:$0xf]
        %v1278 = vld [vmem:[%s309 + $0x8] sm:$0xf]
        %v1279 = vld [vmem:[%s309 + $0xc] sm:$0xf]
        %v1280 = vld [vmem:[%s309 + $0x10] sm:$0xf]
        %v1281 = vld [vmem:[%s309 + $0x14] sm:$0xf]
        %v1282 = vld [vmem:[%s309 + $0x18] sm:$0xf]
        %v1283 = vld [vmem:[%s309 + $0x1c] sm:$0xf]
        %v1284 = vld [vmem:[%s309 + $0x20] sm:$0xf]
        %v1285 = vld [vmem:[%s309 + $0x24] sm:$0xf]
        %v1286 = vld [vmem:[%s309 + $0x28] sm:$0xf]
        %v1287 = vld [vmem:[%s309 + $0x2c] sm:$0xf]
        %v1288 = vld [vmem:[%s309 + $0x30] sm:$0xf]
        %v1289 = vld [vmem:[%s309 + $0x34] sm:$0xf]
        %v1290 = vld [vmem:[%s309 + $0x38] sm:$0xf]
        %v1291 = vld [vmem:[%s309 + $0x3c] sm:$0xf]
        %v1295 = vunpack.c.l.b16 %v1257
        %v1296 = vunpack.c.l.b16 %v1258
        %v1297 = vunpack.c.l.b16 %v1275
        %v1298 = vpack.c.b16 %v1296, %v1295
        %v1299 = vpack.c.b16 %v1297, %v1297
        %v1301 = vshrl.u32 %v1298, 16
        %v1303 = vshll.u32 %v1298, 16
        %v1305 = vrot.slane %v1303, 1
        %v1306 = vor.u32 %v1301, %v1305
        %v1308 = vshll.u32 %v1299, 16
        %v1310 = vrot.slane %v1308, 1
        %v1311 = vsel %vm334, %v1306, %v1310
        %v1329 = vunpack.c.l.b16 %v1276
        %v1330 = vunpack.c.l.b16 %v1277
        %v1331 = vunpack.c.l.b16 %v1278
        %v1332 = vunpack.c.l.b16 %v1279
        %v1333 = vunpack.c.l.b16 %v1280
        %v1334 = vunpack.c.l.b16 %v1281
        %v1335 = vunpack.c.l.b16 %v1282
        %v1336 = vunpack.c.l.b16 %v1283
        %v1337 = vunpack.c.l.b16 %v1284
        %v1338 = vunpack.c.l.b16 %v1285
        %v1339 = vunpack.c.l.b16 %v1286
        %v1340 = vunpack.c.l.b16 %v1287
        %v1341 = vunpack.c.l.b16 %v1288
        %v1342 = vunpack.c.l.b16 %v1289
        %v1343 = vunpack.c.l.b16 %v1290
        %v1344 = vunpack.c.l.b16 %v1291
        %v1345 = vpack.c.b16 %v1330, %v1329
        %v1346 = vpack.c.b16 %v1332, %v1331
        %v1347 = vpack.c.b16 %v1334, %v1333
        %v1348 = vpack.c.b16 %v1336, %v1335
        %v1349 = vpack.c.b16 %v1338, %v1337
        %v1350 = vpack.c.b16 %v1340, %v1339
        %v1351 = vpack.c.b16 %v1342, %v1341
        %v1352 = vpack.c.b16 %v1344, %v1343
        %1361 = vmatpush.bf16.msra.mxu0 %v1352
        %1362 = vmatpush.bf16.msra.mxu0 %v1351
        %1363 = vmatpush.bf16.msra.mxu0 %v1350
        %1364 = vmatpush.bf16.msra.mxu0 %v1349
        %1365 = vmatpush.bf16.msra.mxu0 %v1348
        %1366 = vmatpush.bf16.msra.mxu0 %v1347
        %1367 = vmatpush.bf16.msra.mxu0 %v1346
        %1368 = vmatpush.bf16.msra.mxu0 %v1345
        %1369 = vmatmul.bf16.gmra.mxu0 %v1311
        %v1370 = vpop.f32.mrf.mxu0
        %v1371 = vadd.f32 0.0, %v1370
        %v1372 = vpop.f32.mrf.mxu0
        %v1373 = vadd.f32 0.0, %v1372
        %1374 = vdwg.mxu0
        %v1392 = vunpack.c.l.b16 %v1259
        %v1393 = vunpack.c.l.b16 %v1260
        %v1394 = vunpack.c.l.b16 %v1261
        %v1395 = vunpack.c.l.b16 %v1262
        %v1396 = vunpack.c.l.b16 %v1263
        %v1397 = vunpack.c.l.b16 %v1264
        %v1398 = vunpack.c.l.b16 %v1265
        %v1399 = vunpack.c.l.b16 %v1266
        %v1400 = vunpack.c.l.b16 %v1267
        %v1401 = vunpack.c.l.b16 %v1268
        %v1402 = vunpack.c.l.b16 %v1269
        %v1403 = vunpack.c.l.b16 %v1270
        %v1404 = vunpack.c.l.b16 %v1271
        %v1405 = vunpack.c.l.b16 %v1272
        %v1406 = vunpack.c.l.b16 %v1273
        %v1407 = vunpack.c.l.b16 %v1274
        %v1408 = vpack.c.b16 %v1393, %v1392
        %v1409 = vpack.c.b16 %v1395, %v1394
        %v1410 = vpack.c.b16 %v1397, %v1396
        %v1411 = vpack.c.b16 %v1399, %v1398
        %v1412 = vpack.c.b16 %v1401, %v1400
        %v1413 = vpack.c.b16 %v1403, %v1402
        %v1414 = vpack.c.b16 %v1405, %v1404
        %v1415 = vpack.c.b16 %v1407, %v1406
        %1424 = vmatpush.bf16.msra.mxu0 %v1415
        %1425 = vmatpush.bf16.msra.mxu0 %v1414
        %1426 = vmatpush.bf16.msra.mxu0 %v1413
        %1427 = vmatpush.bf16.msra.mxu0 %v1412
        %1428 = vmatpush.bf16.msra.mxu0 %v1411
        %1429 = vmatpush.bf16.msra.mxu0 %v1410
        %1430 = vmatpush.bf16.msra.mxu0 %v1409
        %1431 = vmatpush.bf16.msra.mxu0 %v1408
        %1432 = vmatmul.bf16.gmra.mxu0 %v1298
        %v1433 = vpop.f32.mrf.mxu0
        %v1434 = vadd.f32 %v1371, %v1433
        %v1435 = vpop.f32.mrf.mxu0
        %v1436 = vadd.f32 %v1373, %v1435
        %1437 = vdwg.mxu0
        %v1438 = vld [vmem:[#allocation2] sm:$0xe]
        %v1439 = vld [vmem:[%s474] sm:$0xf]
        %v1440 = vld [vmem:[%s474 + $0x4] sm:$0xf]
        %v1441 = vld [vmem:[%s474 + $0x8] sm:$0xf]
        %v1442 = vld [vmem:[%s474 + $0xc] sm:$0xf]
        %v1443 = vld [vmem:[%s474 + $0x10] sm:$0xf]
        %v1444 = vld [vmem:[%s474 + $0x14] sm:$0xf]
        %v1445 = vld [vmem:[%s474 + $0x18] sm:$0xf]
        %v1446 = vld [vmem:[%s474 + $0x1c] sm:$0xf]
        %v1447 = vld [vmem:[%s474 + $0x20] sm:$0xf]
        %v1448 = vld [vmem:[%s474 + $0x24] sm:$0xf]
        %v1449 = vld [vmem:[%s474 + $0x28] sm:$0xf]
        %v1450 = vld [vmem:[%s474 + $0x2c] sm:$0xf]
        %v1451 = vld [vmem:[%s474 + $0x30] sm:$0xf]
        %v1452 = vld [vmem:[%s474 + $0x34] sm:$0xf]
        %v1453 = vld [vmem:[%s474 + $0x38] sm:$0xf]
        %v1454 = vld [vmem:[%s474 + $0x3c] sm:$0xf]
        %v1456 = vunpack.c.l.b16 %v1438
        %v1457 = vpack.c.b16 %v1296, %v1456
        %v1458 = vrot.slane %v1457, 1
        %v1459 = vrot.slane %v1299, 1
        %v1460 = vsel %vm494, %v1458, %v1459
        %v1478 = vunpack.c.l.b16 %v1439
        %v1479 = vunpack.c.l.b16 %v1440
        %v1480 = vunpack.c.l.b16 %v1441
        %v1481 = vunpack.c.l.b16 %v1442
        %v1482 = vunpack.c.l.b16 %v1443
        %v1483 = vunpack.c.l.b16 %v1444
        %v1484 = vunpack.c.l.b16 %v1445
        %v1485 = vunpack.c.l.b16 %v1446
        %v1486 = vunpack.c.l.b16 %v1447
        %v1487 = vunpack.c.l.b16 %v1448
        %v1488 = vunpack.c.l.b16 %v1449
        %v1489 = vunpack.c.l.b16 %v1450
        %v1490 = vunpack.c.l.b16 %v1451
        %v1491 = vunpack.c.l.b16 %v1452
        %v1492 = vunpack.c.l.b16 %v1453
        %v1493 = vunpack.c.l.b16 %v1454
        %v1494 = vpack.c.b16 %v1479, %v1478
        %v1495 = vpack.c.b16 %v1481, %v1480
        %v1496 = vpack.c.b16 %v1483, %v1482
        %v1497 = vpack.c.b16 %v1485, %v1484
        %v1498 = vpack.c.b16 %v1487, %v1486
        %v1499 = vpack.c.b16 %v1489, %v1488
        %v1500 = vpack.c.b16 %v1491, %v1490
        %v1501 = vpack.c.b16 %v1493, %v1492
        %1510 = vmatpush.bf16.msra.mxu0 %v1501
        %1511 = vmatpush.bf16.msra.mxu0 %v1500
        %1512 = vmatpush.bf16.msra.mxu0 %v1499
        %1513 = vmatpush.bf16.msra.mxu0 %v1498
        %1514 = vmatpush.bf16.msra.mxu0 %v1497
        %1515 = vmatpush.bf16.msra.mxu0 %v1496
        %1516 = vmatpush.bf16.msra.mxu0 %v1495
        %1517 = vmatpush.bf16.msra.mxu0 %v1494
        %1518 = vmatmul.bf16.gmra.mxu0 %v1460
        %v1519 = vpop.f32.mrf.mxu0
        %v1520 = vadd.f32 0.0, %v1519
        %v1521 = vpop.f32.mrf.mxu0
        %v1522 = vadd.f32 0.0, %v1521
        %1523 = vdwg.mxu0
        %v1524 = vadd.f32 %v1434, %v1520
        %v1525 = vadd.f32 %v1436, %v1522
        %v1526 = vld [vmem:[#allocation2 + $0x8] sm:$0x3]
        %v1527 = vld [vmem:[%s564] sm:$0xf]
        %v1528 = vld [vmem:[%s564 + $0x4] sm:$0xf]
        %v1529 = vld [vmem:[%s564 + $0x8] sm:$0xf]
        %v1530 = vld [vmem:[%s564 + $0xc] sm:$0xf]
        %v1531 = vld [vmem:[%s564 + $0x10] sm:$0xf]
        %v1532 = vld [vmem:[%s564 + $0x14] sm:$0xf]
        %v1533 = vld [vmem:[%s564 + $0x18] sm:$0xf]
        %v1534 = vld [vmem:[%s564 + $0x1c] sm:$0xf]
        %v1535 = vld [vmem:[%s564 + $0x20] sm:$0xf]
        %v1536 = vld [vmem:[%s564 + $0x24] sm:$0xf]
        %v1537 = vld [vmem:[%s564 + $0x28] sm:$0xf]
        %v1538 = vld [vmem:[%s564 + $0x2c] sm:$0xf]
        %v1539 = vld [vmem:[%s564 + $0x30] sm:$0xf]
        %v1540 = vld [vmem:[%s564 + $0x34] sm:$0xf]
        %v1541 = vld [vmem:[%s564 + $0x38] sm:$0xf]
        %v1542 = vld [vmem:[%s564 + $0x3c] sm:$0xf]
        %v1544 = vunpack.c.l.b16 %v1526
        %v1545 = vpack.c.b16 %v1544, %v1544
        %v1547 = vshrl.u32 %v1457, 16
        %v1549 = vrot.slane %v1547, 1
        %v1550 = vshll.u32 %v1457, 16
        %v1552 = vrot.slane %v1550, 2
        %v1553 = vor.u32 %v1549, %v1552
        %v1555 = vshrl.u32 %v1545, 16
        %v1557 = vrot.slane %v1555, 1
        %v1558 = vshll.u32 %v1545, 16
        %v1560 = vrot.slane %v1558, 2
        %v1561 = vor.u32 %v1557, %v1560
        %v1562 = vsel %vm584, %v1553, %v1561
        %v1580 = vunpack.c.l.b16 %v1527
        %v1581 = vunpack.c.l.b16 %v1528
        %v1582 = vunpack.c.l.b16 %v1529
        %v1583 = vunpack.c.l.b16 %v1530
        %v1584 = vunpack.c.l.b16 %v1531
        %v1585 = vunpack.c.l.b16 %v1532
        %v1586 = vunpack.c.l.b16 %v1533
        %v1587 = vunpack.c.l.b16 %v1534
        %v1588 = vunpack.c.l.b16 %v1535
        %v1589 = vunpack.c.l.b16 %v1536
        %v1590 = vunpack.c.l.b16 %v1537
        %v1591 = vunpack.c.l.b16 %v1538
        %v1592 = vunpack.c.l.b16 %v1539
        %v1593 = vunpack.c.l.b16 %v1540
        %v1594 = vunpack.c.l.b16 %v1541
        %v1595 = vunpack.c.l.b16 %v1542
        %v1596 = vpack.c.b16 %v1581, %v1580
        %v1597 = vpack.c.b16 %v1583, %v1582
        %v1598 = vpack.c.b16 %v1585, %v1584
        %v1599 = vpack.c.b16 %v1587, %v1586
        %v1600 = vpack.c.b16 %v1589, %v1588
        %v1601 = vpack.c.b16 %v1591, %v1590
        %v1602 = vpack.c.b16 %v1593, %v1592
        %v1603 = vpack.c.b16 %v1595, %v1594
        %1612 = vmatpush.bf16.msra.mxu0 %v1603
        %1613 = vmatpush.bf16.msra.mxu0 %v1602
        %1614 = vmatpush.bf16.msra.mxu0 %v1601
        %1615 = vmatpush.bf16.msra.mxu0 %v1600
        %1616 = vmatpush.bf16.msra.mxu0 %v1599
        %1617 = vmatpush.bf16.msra.mxu0 %v1598
        %1618 = vmatpush.bf16.msra.mxu0 %v1597
        %1619 = vmatpush.bf16.msra.mxu0 %v1596
        %1620 = vmatmul.bf16.gmra.mxu0 %v1562
        %v1621 = vpop.f32.mrf.mxu0
        %v1622 = vadd.f32 0.0, %v1621
        %v1623 = vpop.f32.mrf.mxu0
        %v1624 = vadd.f32 0.0, %v1623
        %1625 = vdwg.mxu0
        %v1626 = vadd.f32 %v1524, %v1622
        %v1627 = vadd.f32 %v1525, %v1624
        %v1628 = vld [vmem:[#allocation2] sm:$0xc]
        %v1629 = vld [vmem:[%s668] sm:$0xf]
        %v1630 = vld [vmem:[%s668 + $0x4] sm:$0xf]
        %v1631 = vld [vmem:[%s668 + $0x8] sm:$0xf]
        %v1632 = vld [vmem:[%s668 + $0xc] sm:$0xf]
        %v1633 = vld [vmem:[%s668 + $0x10] sm:$0xf]
        %v1634 = vld [vmem:[%s668 + $0x14] sm:$0xf]
        %v1635 = vld [vmem:[%s668 + $0x18] sm:$0xf]
        %v1636 = vld [vmem:[%s668 + $0x1c] sm:$0xf]
        %v1637 = vld [vmem:[%s668 + $0x20] sm:$0xf]
        %v1638 = vld [vmem:[%s668 + $0x24] sm:$0xf]
        %v1639 = vld [vmem:[%s668 + $0x28] sm:$0xf]
        %v1640 = vld [vmem:[%s668 + $0x2c] sm:$0xf]
        %v1641 = vld [vmem:[%s668 + $0x30] sm:$0xf]
        %v1642 = vld [vmem:[%s668 + $0x34] sm:$0xf]
        %v1643 = vld [vmem:[%s668 + $0x38] sm:$0xf]
        %v1644 = vld [vmem:[%s668 + $0x3c] sm:$0xf]
        %v1646 = vunpack.c.l.b16 %v1628
        %v1647 = vpack.c.b16 %v1296, %v1646
        %v1648 = vrot.slane %v1647, 2
        %v1649 = vrot.slane %v1545, 2
        %v1650 = vsel %vm688, %v1648, %v1649
        %v1668 = vunpack.c.l.b16 %v1629
        %v1669 = vunpack.c.l.b16 %v1630
        %v1670 = vunpack.c.l.b16 %v1631
        %v1671 = vunpack.c.l.b16 %v1632
        %v1672 = vunpack.c.l.b16 %v1633
        %v1673 = vunpack.c.l.b16 %v1634
        %v1674 = vunpack.c.l.b16 %v1635
        %v1675 = vunpack.c.l.b16 %v1636
        %v1676 = vunpack.c.l.b16 %v1637
        %v1677 = vunpack.c.l.b16 %v1638
        %v1678 = vunpack.c.l.b16 %v1639
        %v1679 = vunpack.c.l.b16 %v1640
        %v1680 = vunpack.c.l.b16 %v1641
        %v1681 = vunpack.c.l.b16 %v1642
        %v1682 = vunpack.c.l.b16 %v1643
        %v1683 = vunpack.c.l.b16 %v1644
        %v1684 = vpack.c.b16 %v1669, %v1668
        %v1685 = vpack.c.b16 %v1671, %v1670
        %v1686 = vpack.c.b16 %v1673, %v1672
        %v1687 = vpack.c.b16 %v1675, %v1674
        %v1688 = vpack.c.b16 %v1677, %v1676
        %v1689 = vpack.c.b16 %v1679, %v1678
        %v1690 = vpack.c.b16 %v1681, %v1680
        %v1691 = vpack.c.b16 %v1683, %v1682
        %1700 = vmatpush.bf16.msra.mxu0 %v1691
        %1701 = vmatpush.bf16.msra.mxu0 %v1690
        %1702 = vmatpush.bf16.msra.mxu0 %v1689
        %1703 = vmatpush.bf16.msra.mxu0 %v1688
        %1704 = vmatpush.bf16.msra.mxu0 %v1687
        %1705 = vmatpush.bf16.msra.mxu0 %v1686
        %1706 = vmatpush.bf16.msra.mxu0 %v1685
        %1707 = vmatpush.bf16.msra.mxu0 %v1684
        %1708 = vmatmul.bf16.gmra.mxu0 %v1650
        %v1709 = vpop.f32.mrf.mxu0
        %v1710 = vadd.f32 0.0, %v1709
        %v1711 = vpop.f32.mrf.mxu0
        %v1712 = vadd.f32 0.0, %v1711
        %1713 = vdwg.mxu0
        %v1714 = vadd.f32 %v1626, %v1710
        %v1715 = vadd.f32 %v1627, %v1712
        %v1716 = vadd.f32 %v1714, %v758
        %v1717 = vadd.f32 %v1715, %v758
        %v1718 = vmax.f32 %v1716, 0.0
        %v1719 = vmax.f32 %v1717, 0.0
        %v1720 = vpack.c.bf16 %v1718, %v1718
        %v1721 = vpack.c.bf16 %v1719, %v1719
        %v1724 = vrot.slane %v1720, 7
        %v1725 = vrot.slane %v1724, 4
        %v1726 = vrot.slane %v1721, 7
        %v1727 = vsel %vm277, %v1725, %v1726
        %v1728 = vrot.slane %v1726, 4
        %1732 = vst [vmem:[#allocation2] sm:$0xe] %v1724
        %1733 = vst [vmem:[#allocation2 + $0x4] sm:$0xf] %v1727
        %1734 = vst [vmem:[#allocation2 + $0x8] sm:$0x1] %v1728
        %v1735 = vld [vmem:[%s4] sm:$0xf]
        %v1736 = vld [vmem:[%s4 + $0x4] sm:$0xf]
        %v1737 = vld [vmem:[#allocation2] sm:$0xf]
        %v1738 = vld [vmem:[#allocation2 + $0x4] sm:$0xf]
        %s1739 = scalar_lea.vmem %s4, 8
        %v1740 = vld [vmem:[%s1739] sm:$0xf]
        %v1741 = vld [vmem:[%s1739 + $0x4] sm:$0xf]
        %v1742 = vld [vmem:[#allocation2 + $0x8] sm:$0x1]
        %v1745 = vunpack.c.l.b16 %v1740
        %v1746 = vunpack.c.l.b16 %v1741
        %v1747 = vpack.c.b16 %v1746, %v1745
        %v1752 = vunpack.c.l.b16 %v1737
        %v1753 = vunpack.c.l.b16 %v1738
        %v1754 = vunpack.c.l.b16 %v1742
        %v1755 = vpack.c.b16 %v1753, %v1752
        %v1756 = vpack.c.b16 %v1754, %v1754
        %v1758 = vshrl.u32 %v1755, 16
        %v1760 = vshll.u32 %v1755, 16
        %v1762 = vrot.slane %v1760, 1
        %v1763 = vor.u32 %v1758, %v1762
        %v1765 = vshll.u32 %v1756, 16
        %v1767 = vrot.slane %v1765, 1
        %v1768 = vsel %vm334, %v1763, %v1767
        %1770 = vmatpush.bf16.xpose.msra.mxu0 0
        %1771 = vmatpush.bf16.xpose.msra.mxu0 0
        %1772 = vmatpush.bf16.xpose.msra.mxu0 0
        %1773 = vmatpush.bf16.xpose.msra.mxu0 0
        %1774 = vmatpush.bf16.xpose.msra.mxu0 0
        %1775 = vmatpush.bf16.xpose.msra.mxu0 0
        %1776 = vmatpush.bf16.xpose.msra.mxu0 0
        %1777 = vmatpush.bf16.xpose.msra.mxu0 %v1768
        %1778 = vmatmul.bf16.gmra.mxu0 %v1747
        %v1779 = vpop.f32.mrf.mxu0
        %v1780 = vadd.f32 0.0, %v1779
        %v1781 = vpop.f32.mrf.mxu0
        %v1782 = vadd.f32 0.0, %v1781
        %1783 = vdwg.mxu0
        %v1786 = vunpack.c.l.b16 %v1735
        %v1787 = vunpack.c.l.b16 %v1736
        %v1788 = vpack.c.b16 %v1787, %v1786
        %1791 = vmatpush.bf16.xpose.msra.mxu0 0
        %1792 = vmatpush.bf16.xpose.msra.mxu0 0
        %1793 = vmatpush.bf16.xpose.msra.mxu0 0
        %1794 = vmatpush.bf16.xpose.msra.mxu0 0
        %1795 = vmatpush.bf16.xpose.msra.mxu0 0
        %1796 = vmatpush.bf16.xpose.msra.mxu0 0
        %1797 = vmatpush.bf16.xpose.msra.mxu0 0
        %1798 = vmatpush.bf16.xpose.msra.mxu0 %v1755
        %1799 = vmatmul.bf16.gmra.mxu0 %v1788
        %v1800 = vpop.f32.mrf.mxu0
        %v1801 = vadd.f32 %v1780, %v1800
        %v1802 = vpop.f32.mrf.mxu0
        %v1803 = vadd.f32 %v1782, %v1802
        %1804 = vdwg.mxu0
        %s1805 = scalar_lea.vmem %s4, 16
        %v1806 = vld [vmem:[%s1805] sm:$0xf]
        %v1807 = vld [vmem:[%s1805 + $0x4] sm:$0xf]
        %v1808 = vld [vmem:[#allocation2] sm:$0xe]
        %v1811 = vunpack.c.l.b16 %v1806
        %v1812 = vunpack.c.l.b16 %v1807
        %v1813 = vpack.c.b16 %v1812, %v1811
        %v1816 = vunpack.c.l.b16 %v1808
        %v1817 = vpack.c.b16 %v1753, %v1816
        %v1818 = vrot.slane %v1817, 1
        %v1819 = vrot.slane %v1756, 1
        %v1820 = vsel %vm494, %v1818, %v1819
        %1822 = vmatpush.bf16.xpose.msra.mxu0 0
        %1823 = vmatpush.bf16.xpose.msra.mxu0 0
        %1824 = vmatpush.bf16.xpose.msra.mxu0 0
        %1825 = vmatpush.bf16.xpose.msra.mxu0 0
        %1826 = vmatpush.bf16.xpose.msra.mxu0 0
        %1827 = vmatpush.bf16.xpose.msra.mxu0 0
        %1828 = vmatpush.bf16.xpose.msra.mxu0 0
        %1829 = vmatpush.bf16.xpose.msra.mxu0 %v1820
        %1830 = vmatmul.bf16.gmra.mxu0 %v1813
        %v1831 = vpop.f32.mrf.mxu0
        %v1832 = vadd.f32 0.0, %v1831
        %v1833 = vpop.f32.mrf.mxu0
        %v1834 = vadd.f32 0.0, %v1833
        %1835 = vdwg.mxu0
        %v1836 = vadd.f32 %v1801, %v1832
        %v1837 = vadd.f32 %v1803, %v1834
        %s1838 = scalar_lea.vmem %s4, 24
        %v1839 = vld [vmem:[%s1838] sm:$0xf]
        %v1840 = vld [vmem:[%s1838 + $0x4] sm:$0xf]
        %v1841 = vld [vmem:[#allocation2 + $0x8] sm:$0x3]
        %v1844 = vunpack.c.l.b16 %v1839
        %v1845 = vunpack.c.l.b16 %v1840
        %v1846 = vpack.c.b16 %v1845, %v1844
        %v1849 = vunpack.c.l.b16 %v1841
        %v1850 = vpack.c.b16 %v1849, %v1849
        %v1852 = vshrl.u32 %v1817, 16
        %v1854 = vrot.slane %v1852, 1
        %v1855 = vshll.u32 %v1817, 16
        %v1857 = vrot.slane %v1855, 2
        %v1858 = vor.u32 %v1854, %v1857
        %v1860 = vshrl.u32 %v1850, 16
        %v1862 = vrot.slane %v1860, 1
        %v1863 = vshll.u32 %v1850, 16
        %v1865 = vrot.slane %v1863, 2
        %v1866 = vor.u32 %v1862, %v1865
        %v1867 = vsel %vm584, %v1858, %v1866
        %1869 = vmatpush.bf16.xpose.msra.mxu0 0
        %1870 = vmatpush.bf16.xpose.msra.mxu0 0
        %1871 = vmatpush.bf16.xpose.msra.mxu0 0
        %1872 = vmatpush.bf16.xpose.msra.mxu0 0
        %1873 = vmatpush.bf16.xpose.msra.mxu0 0
        %1874 = vmatpush.bf16.xpose.msra.mxu0 0
        %1875 = vmatpush.bf16.xpose.msra.mxu0 0
        %1876 = vmatpush.bf16.xpose.msra.mxu0 %v1867
        %1877 = vmatmul.bf16.gmra.mxu0 %v1846
        %v1878 = vpop.f32.mrf.mxu0
        %v1879 = vadd.f32 0.0, %v1878
        %v1880 = vpop.f32.mrf.mxu0
        %v1881 = vadd.f32 0.0, %v1880
        %1882 = vdwg.mxu0
        %v1883 = vadd.f32 %v1836, %v1879
        %v1884 = vadd.f32 %v1837, %v1881
        %s1885 = scalar_lea.vmem %s4, 32
        %v1886 = vld [vmem:[%s1885] sm:$0xf]
        %v1887 = vld [vmem:[%s1885 + $0x4] sm:$0xf]
        %v1888 = vld [vmem:[#allocation2] sm:$0xc]
        %v1891 = vunpack.c.l.b16 %v1886
        %v1892 = vunpack.c.l.b16 %v1887
        %v1893 = vpack.c.b16 %v1892, %v1891
        %v1896 = vunpack.c.l.b16 %v1888
        %v1897 = vpack.c.b16 %v1753, %v1896
        %v1898 = vrot.slane %v1897, 2
        %v1899 = vrot.slane %v1850, 2
        %v1900 = vsel %vm688, %v1898, %v1899
        %1902 = vmatpush.bf16.xpose.msra.mxu0 0
        %1903 = vmatpush.bf16.xpose.msra.mxu0 0
        %1904 = vmatpush.bf16.xpose.msra.mxu0 0
        %1905 = vmatpush.bf16.xpose.msra.mxu0 0
        %1906 = vmatpush.bf16.xpose.msra.mxu0 0
        %1907 = vmatpush.bf16.xpose.msra.mxu0 0
        %1908 = vmatpush.bf16.xpose.msra.mxu0 0
        %1909 = vmatpush.bf16.xpose.msra.mxu0 %v1900
        %1910 = vmatmul.bf16.gmra.mxu0 %v1893
        %v1911 = vpop.f32.mrf.mxu0
        %v1912 = vadd.f32 0.0, %v1911
        %v1913 = vpop.f32.mrf.mxu0
        %v1914 = vadd.f32 0.0, %v1913
        %1915 = vdwg.mxu0
        %v1916 = vadd.f32 %v1883, %v1912
        %v1917 = vadd.f32 %v1884, %v1914
        %v1918 = vld [vmem:[%s5] sm:$0xff]
        %v1919 = vld [vmem:[%s5 + $0x8] sm:$0xff]
        %1921 = vset.pattern.permute.xlu0 0
        %1922 = vperm.xlu0 %1921, %v1918
        %v1923 = vpop.permute.xlu0 %1922
        %1926 = vset.pattern.permute.xlu0 0
        %1927 = vperm.xlu0 %1926, %v1919
        %v1928 = vpop.permute.xlu0 %1927
        %v1930 = vadd.f32 %v1916, %v1923
        %v1931 = vadd.f32 %v1917, %v1928
        %v1932 = vld [vmem:[%s266] sm:$0xff]
        %vm1933 = vcmask 130048
        %v1934 = vsel %vm1933, %v1932, 0.0
        %1935 = vadd.xlane.f32.xlu0 %v1934
        %v1936 = vpop.xlane.xlu0 %1935
        %v1937 = vrcp.pop 16.0
        %v1938 = vmul.f32 16.0, %v1937
        %v1939 = vsub.f32 1.0, %v1938
        %v1940 = vmul.f32 %v1937, %v1939
        %v1941 = vadd.f32 %v1937, %v1940
        %vm1942 = vweird.f32 %v1937
        %v1943 = vsel %vm1942, %v1937, %v1941
        %v1944 = vmul.f32 %v1936, %v1943
        %v1945 = vsub.f32 %v1932, %v1944
        %v1946 = vmul.f32 %v1945, %v1945
        %v1947 = vsel %vm1933, %v1946, 0.0
        %1948 = vadd.xlane.f32.xlu0 %v1947
        %v1949 = vpop.xlane.xlu0 %1948
        %v1950 = vmul.f32 %v1949, %v1943
        %v1951 = vadd.f32 %v1950, 1e-05
        %v1952 = vrsqrt.pop %v1951
        %v1953 = vmul.f32 %v1952, %v1951
        %v1954 = vmul.f32 %v1953, %v1952
        %v1955 = vmul.f32 0.5, %v1954
        %v1956 = vsub.f32 1.5, %v1955
        %v1957 = vmul.f32 %v1952, %v1956
        %vm1958 = vweird.f32 %v1951
        %vm1959 = vweird.f32 %v1952
        %vm1960 = vmor %vm1958, %vm1959
        %v1961 = vsel %vm1960, %v1952, %v1957
        %v1962 = vmul.f32 %v1945, %v1961
        %v1963 = vadd.f32 %v1930, 1.0
        %v1964 = vmul.f32 %v1962, %v1963
        %v1965 = vadd.f32 %v1964, %v1931
        %1966 = vst.msk [vmem:[%s257] sm:$0xff] %vm1933, %v1965
        %s1967 = sand.u32 %s164, 1
        %s1968 = scalar_lea.sflag [#allocation4], %s1967
        %s1969 = sand.u32 %s164, 1
        %s1970 = smul.addr %s1969, 8
        %s1971 = scalar_lea.vmem [#allocation3], %s1970
        // Predicated region
        $region45: #{tfan_1d_forward.1} parent=43 // pred_check
          %p1972 = pneg %p174
        $region46: #{tfan_1d_forward.1} parent=43 // pred_check_branch
          %1974 = sbr.rel (%p1972) target = $region48
        $region47: #{tfan_1d_forward.1} parent=43 // pred_region
          %1976 = vsyncadd %s1968, 0
          %s1977 = smul.addr %s20, 8
          %s1978 = scalar_lea.hbm %s6, %s1977
          %s1980 = sshll.u32 %s1971, 4
          %s1981 = int_to_ptr.vmem [resolvable:$true] %s1980
          %s1982 = sshll.u32 %s1978, 4
          %s1983 = int_to_ptr.hbm [resolvable:$true] %s1982
          %1985 = dma.vmem_to_hbm [thread:$0]  %s1981, 128, %s1983, %s1968
        $region48: #{tfan_1d_forward.1} parent=43 // pred_fallthru
          _
      $region44: #{tfan_1d_forward.1} parent=5 // pred_fallthru
        _
      %p1986 = scmp.le.s32.totalorder 2, %s15
      // Predicated region
      $region49: #{tfan_1d_forward.1} parent=5 // pred_check
        %p1987 = pneg %p1986
      $region50: #{tfan_1d_forward.1} parent=5 // pred_check_branch
        %1989 = sbr.rel (%p1987) target = $region52
      $region51: #{tfan_1d_forward.1} parent=5 // pred_region
        %s1990 = ssub.s32 %s15, 2
        // Predicated region
        $region53: #{tfan_1d_forward.1} parent=51 // pred_check
          %p1991 = pneg %p180
        $region54: #{tfan_1d_forward.1} parent=51 // pred_check_branch
          %1993 = sbr.rel (%p1991) target = $region56
        $region55: #{tfan_1d_forward.1} parent=51 // pred_region
          %s1994 = sand.u32 %s165, 1
          %s1995 = scalar_lea.sflag [#allocation4], %s1994
          %s1996 = sand.u32 %s165, 1
          %s1997 = smul.addr %s1996, 8
          %s1998 = scalar_lea.vmem [#allocation3], %s1997
          %2000 = dma.done %s1995, 128
        $region56: #{tfan_1d_forward.1} parent=51 // pred_fallthru
          _
      $region52: #{tfan_1d_forward.1} parent=5 // pred_fallthru
        _
    $region6: #{tfan_1d_forward.1} parent=1 // loop_footer
      %s19 = sadd.s32 1, %s15
    $region7: #{tfan_1d_forward.1} parent=1 // loop_footer_branch
      %14 = sbr.rel target = $region3
    $region8: #{tfan_1d_forward.1} parent=1 // loop_exit
      _
    %2001 = vsyncpa [#allocation4], 1
    %s2002 = scalar_lea.sflag [#allocation4], 1
    %2003 = vsyncpa %s2002, 1

</llo_original>
